<compile_context>
chip_gen: v6e
topology: v6e:2x2x1
jax: 0.10.0
libtpu: 0.0.40
codegen_flags: <defaults>
</compile_context>

<pallas_src>
import jax
import jax.numpy as jnp
import numpy as np
from jax.experimental import pallas as pl
from jax.experimental.pallas import tpu as pltpu

# ---- model hyper-parameters (small, consistent with TrainArgs defaults, scaled down) ----
M = 16       # number of molecules (batch)
A = 16       # max atoms per molecule
F = 32       # atom feature dim
H = 32       # hidden_size
FFN_H = 32   # ffn_hidden_size
OUT = 4      # num_tasks (classification)
DEPTH = 3    # message passing depth

G = 8        # molecules packed per grid step  (G*A = 128 stacked atom rows = 1 MXU tile)
GA = G * A   # 128 stacked atom rows per group
NG = M // G  # grid extent (number of molecule groups)


def molecule_model_kernel(
    fa_ref, adj_ref, r_ref,
    wi_ref, wh_ref, wof_ref, wom_ref, w1_ref, b1_ref, w2_ref, b2_ref,
    encoded_ref, logits_ref, preds_ref,
):
    """Processes G molecules per grid step: full MPN encoder + FFN + sigmoid."""
    f32 = jnp.float32
    bf16 = jnp.bfloat16

    fa = fa_ref[0]        # (GA, F)   bf16 stacked atom features for this group
    adj = adj_ref[0]      # (GA, GA)  bf16 block-diagonal adjacency for this group
    r = r_ref[0]          # (G, GA)   bf16 mean-pool readout matrix for this group

    # --- MPN encoder (f32 accumulation on the MXU) ---
    h0 = jnp.maximum(jnp.dot(fa, wi_ref[...], preferred_element_type=f32), 0.0)
    h = h0
    for _ in range(DEPTH - 1):
        msg = jnp.dot(adj, h.astype(bf16), preferred_element_type=f32)
        h = jnp.maximum(
            h0 + jnp.dot(msg.astype(bf16), wh_ref[...], preferred_element_type=f32), 0.0)

    a_msg = jnp.dot(adj, h.astype(bf16), preferred_element_type=f32)
    # W_o applied as two matmuls on the split weights (no lane-axis concat).
    atom_h = jnp.maximum(
        jnp.dot(fa, wof_ref[...], preferred_element_type=f32)
        + jnp.dot(a_msg.astype(bf16), wom_ref[...], preferred_element_type=f32), 0.0)

    # Mean readout over real atoms of each molecule == one (G, GA) @ (GA, H) matmul.
    mol = jnp.dot(r, atom_h.astype(bf16), preferred_element_type=f32)   # (G, H)
    encoded_ref[...] = mol

    # --- FFN (dropout = identity in eval) ---
    z = jnp.maximum(
        jnp.dot(mol.astype(bf16), w1_ref[...], preferred_element_type=f32) + b1_ref[...],
        0.0)
    logits = jnp.dot(z.astype(bf16), w2_ref[...], preferred_element_type=f32) + b2_ref[...]
    logits_ref[...] = logits

    # --- classification head (eval): sigmoid ---
    preds_ref[...] = jax.nn.sigmoid(logits)


def molecule_model_forward(f_group, adj_bd, r_mat, params):
    """f_group: (NG, GA, F) bf16, adj_bd: (NG, GA, GA) bf16, r_mat: (NG, G, GA) bf16."""
    wi, wh, wof, wom, w1, b1, w2, b2 = params

    def full(arr):
        shp = arr.shape
        return pl.BlockSpec(shp, lambda i: (0,) * len(shp))

    out_shapes = (
        jax.ShapeDtypeStruct((M, H), jnp.float32),     # encoded
        jax.ShapeDtypeStruct((M, OUT), jnp.float32),   # logits
        jax.ShapeDtypeStruct((M, OUT), jnp.float32),   # preds (sigmoid)
    )

    encoded, logits, preds = pl.pallas_call(
        molecule_model_kernel,
        out_shape=out_shapes,
        grid_spec=pltpu.PrefetchScalarGridSpec(
            num_scalar_prefetch=0,
            grid=(NG,),
            in_specs=[
                pl.BlockSpec((1, GA, F), lambda i: (i, 0, 0)),
                pl.BlockSpec((1, GA, GA), lambda i: (i, 0, 0)),
                pl.BlockSpec((1, G, GA), lambda i: (i, 0, 0)),
                full(wi), full(wh), full(wof), full(wom),
                full(w1), full(b1), full(w2), full(b2),
            ],
            out_specs=[
                pl.BlockSpec((G, H), lambda i: (i, 0)),
                pl.BlockSpec((G, OUT), lambda i: (i, 0)),
                pl.BlockSpec((G, OUT), lambda i: (i, 0)),
            ],
        ),
        compiler_params=pltpu.CompilerParams(
            dimension_semantics=("parallel",)),
    )(f_group, adj_bd, r_mat, wi, wh, wof, wom, w1, b1, w2, b2)

    output_dict = {"encoded": encoded, "logits": logits, "preds": preds}
    return preds, output_dict


def reference_forward(f_atoms, adj, mask, inv_n, params_f32):
    """Plain-JAX f32 per-molecule reference of the original module semantics."""
    wi, wh, wo, w1, b1, w2, b2 = params_f32
    h0 = jax.nn.relu(jnp.einsum("maf,fh->mah", f_atoms, wi))
    h = h0
    for _ in range(DEPTH - 1):
        msg = jnp.einsum("mab,mbh->mah", adj, h)
        h = jax.nn.relu(h0 + jnp.einsum("mah,hk->mak", msg, wh))
    a_msg = jnp.einsum("mab,mbh->mah", adj, h)
    a_input = jnp.concatenate([f_atoms, a_msg], axis=-1)
    atom_h = jax.nn.relu(jnp.einsum("mac,ch->mah", a_input, wo)) * mask[..., None]
    mol = jnp.sum(atom_h, axis=1) * inv_n[:, None]
    z = jax.nn.relu(mol @ w1 + b1)
    logits = z @ w2 + b2
    return mol, logits, jax.nn.sigmoid(logits)


def init_params(key):
    ks = jax.random.split(key, 8)
    scale = 0.1
    wi = scale * jax.random.normal(ks[0], (F, H), jnp.float32)
    wh = scale * jax.random.normal(ks[1], (H, H), jnp.float32)
    wof = scale * jax.random.normal(ks[2], (F, H), jnp.float32)    # W_o rows for f_atoms
    wom = scale * jax.random.normal(ks[3], (H, H), jnp.float32)    # W_o rows for a_msg
    w1 = scale * jax.random.normal(ks[4], (H, FFN_H), jnp.float32)
    b1 = scale * jax.random.normal(ks[5], (1, FFN_H), jnp.float32)
    w2 = scale * jax.random.normal(ks[6], (FFN_H, OUT), jnp.float32)
    b2 = scale * jax.random.normal(ks[7], (1, OUT), jnp.float32)
    return wi, wh, wof, wom, w1, b1, w2, b2


if __name__ == "__main__":
    key = jax.random.PRNGKey(0)
    k_feat, k_adj, k_param = jax.random.split(key, 3)

    # atom features
    f_atoms = jax.random.normal(k_feat, (M, A, F), jnp.float32)

    # per-molecule atom counts (all >= 1, so no divide-by-zero in the readout)
    n_atoms = np.array([12, 16, 9, 14, 16, 10, 8, 13,
                        15, 11, 16, 9, 12, 10, 14, 16], dtype=np.int32)
    mask = jnp.asarray((np.arange(A)[None, :] < n_atoms[:, None]).astype(np.float32))  # (M, A)
    inv_n = jnp.asarray(1.0 / n_atoms.astype(np.float32))                              # (M,)

    # random symmetric adjacency over real atoms, zero diagonal
    raw = jax.random.bernoulli(k_adj, 0.3, (M, A, A)).astype(jnp.float32)
    adj = jnp.triu(raw, 1)
    adj = adj + jnp.swapaxes(adj, 1, 2)
    adj = adj * mask[:, :, None] * mask[:, None, :]

    params = init_params(k_param)
    wi, wh, wof, wom, w1, b1, w2, b2 = params

    # ---- host-side packing: G molecules per grid step, atoms stacked on the sublane axis ----
    eye = jnp.eye(G, dtype=jnp.float32)
    f_group = f_atoms.reshape(NG, GA, F)                                        # (NG, 128, F)
    adj_bd = (adj.reshape(NG, G, A, A)[:, :, None, :, :]
              * eye[None, :, :, None, None]).transpose(0, 1, 3, 2, 4).reshape(NG, GA, GA)
    w_read = mask * inv_n[:, None]                                              # (M, A)
    r_mat = (w_read.reshape(NG, G, A)[:, :, None, :]
             * eye[None, :, :, None]).reshape(NG, G, GA)                        # (NG, G, 128)

    bf16 = jnp.bfloat16
    kernel_params = (wi.astype(bf16), wh.astype(bf16), wof.astype(bf16), wom.astype(bf16),
                     w1.astype(bf16), b1, w2.astype(bf16), b2)

    preds, out_dict = molecule_model_forward(
        f_group.astype(bf16), adj_bd.astype(bf16), r_mat.astype(bf16), kernel_params)
    jax.block_until_ready(preds)

    # ---- verify against the per-molecule f32 reference (original concat-form W_o) ----
    wo = jnp.concatenate([wof, wom], axis=0)   # original W_o = [W_o_f ; W_o_m]
    ref_enc, ref_logits, ref_preds = reference_forward(
        f_atoms, adj, mask, inv_n, (wi, wh, wo, w1, b1, w2, b2))
    # bf16 MXU operands vs f32 reference: ~1% relative error expected; 5e-2 is ample margin.
    np.testing.assert_allclose(np.asarray(out_dict["encoded"]), np.asarray(ref_enc),
                               rtol=5e-2, atol=5e-2)
    np.testing.assert_allclose(np.asarray(out_dict["logits"]), np.asarray(ref_logits),
                               rtol=5e-2, atol=5e-2)
    np.testing.assert_allclose(np.asarray(preds), np.asarray(ref_preds),
                               rtol=5e-2, atol=5e-2)

    print("KERNEL_OK")
</pallas_src>

<mosaic_0001>
module attributes {stable_mosaic.version = 11 : i64} {
  func.func @molecule_model_kernel(%arg0: i32, %arg1: memref<1x128x32xbf16, #tpu.memory_space<vmem>>, %arg2: memref<1x128x128xbf16, #tpu.memory_space<vmem>>, %arg3: memref<1x8x128xbf16, #tpu.memory_space<vmem>>, %arg4: memref<32x32xbf16, #tpu.memory_space<vmem>>, %arg5: memref<32x32xbf16, #tpu.memory_space<vmem>>, %arg6: memref<32x32xbf16, #tpu.memory_space<vmem>>, %arg7: memref<32x32xbf16, #tpu.memory_space<vmem>>, %arg8: memref<32x32xbf16, #tpu.memory_space<vmem>>, %arg9: memref<1x32xf32, #tpu.memory_space<vmem>>, %arg10: memref<32x4xbf16, #tpu.memory_space<vmem>>, %arg11: memref<1x4xf32, #tpu.memory_space<vmem>>, %arg12: memref<8x32xf32, #tpu.memory_space<vmem>>, %arg13: memref<8x4xf32, #tpu.memory_space<vmem>>, %arg14: memref<8x4xf32, #tpu.memory_space<vmem>>) attributes {dimension_semantics = [#tpu.dimension_semantics<parallel>], iteration_bounds = array<i64: 2>, scalar_prefetch = 0 : i64, scratch_operands = 0 : i64, tpu.core_type = #tpu.core_type<tc>, window_params = [{transform_indices = @transform_0, window_bounds = array<i64: 1, 128, 32>}, {transform_indices = @transform_1, window_bounds = array<i64: 1, 128, 128>}, {transform_indices = @transform_2, window_bounds = array<i64: 1, 8, 128>}, {pipeline_mode = #tpu.pipeline_mode<synchronous>, transform_indices = @transform_3, window_bounds = array<i64: 32, 32>}, {pipeline_mode = #tpu.pipeline_mode<synchronous>, transform_indices = @transform_4, window_bounds = array<i64: 32, 32>}, {pipeline_mode = #tpu.pipeline_mode<synchronous>, transform_indices = @transform_5, window_bounds = array<i64: 32, 32>}, {pipeline_mode = #tpu.pipeline_mode<synchronous>, transform_indices = @transform_6, window_bounds = array<i64: 32, 32>}, {pipeline_mode = #tpu.pipeline_mode<synchronous>, transform_indices = @transform_7, window_bounds = array<i64: 32, 32>}, {pipeline_mode = #tpu.pipeline_mode<synchronous>, transform_indices = @transform_8, window_bounds = array<i64: 1, 32>}, {pipeline_mode = #tpu.pipeline_mode<synchronous>, transform_indices = @transform_9, window_bounds = array<i64: 32, 4>}, {pipeline_mode = #tpu.pipeline_mode<synchronous>, transform_indices = @transform_10, window_bounds = array<i64: 1, 4>}, {transform_indices = @transform_11, window_bounds = array<i64: 8, 32>}, {transform_indices = @transform_12, window_bounds = array<i64: 8, 4>}, {transform_indices = @transform_13, window_bounds = array<i64: 8, 4>}]} {
    %c0 = arith.constant 0 : index
    %c0_0 = arith.constant 0 : index
    %c0_1 = arith.constant 0 : index
    %0 = vector.load %arg1[%c0, %c0_0, %c0_1] : memref<1x128x32xbf16, #tpu.memory_space<vmem>>, vector<1x128x32xbf16>
    %1 = vector.shape_cast %0 : vector<1x128x32xbf16> to vector<128x32xbf16>
    %c0_2 = arith.constant 0 : index
    %c0_3 = arith.constant 0 : index
    %c0_4 = arith.constant 0 : index
    %2 = vector.load %arg2[%c0_2, %c0_3, %c0_4] : memref<1x128x128xbf16, #tpu.memory_space<vmem>>, vector<1x128x128xbf16>
    %3 = vector.shape_cast %2 : vector<1x128x128xbf16> to vector<128x128xbf16>
    %c0_5 = arith.constant 0 : index
    %c0_6 = arith.constant 0 : index
    %c0_7 = arith.constant 0 : index
    %4 = vector.load %arg3[%c0_5, %c0_6, %c0_7] : memref<1x8x128xbf16, #tpu.memory_space<vmem>>, vector<1x8x128xbf16>
    %5 = vector.shape_cast %4 : vector<1x8x128xbf16> to vector<8x128xbf16>
    %c0_8 = arith.constant 0 : index
    %c0_9 = arith.constant 0 : index
    %6 = vector.load %arg4[%c0_8, %c0_9] : memref<32x32xbf16, #tpu.memory_space<vmem>>, vector<32x32xbf16>
    %cst = arith.constant dense<0.000000e+00> : vector<128x32xf32>
    %7 = tpu.matmul %1, %6, %cst {dimension_numbers = #tpu.dot_dimension_numbers<[1], [0], [0], [1], [0, 0, 1, 1], [], []>} : vector<128x32xbf16>, vector<32x32xbf16>, vector<128x32xf32> -> vector<128x32xf32>
    %cst_10 = arith.constant 0.000000e+00 : f32
    %8 = vector.broadcast %cst_10 : f32 to vector<128x32xf32>
    %9 = arith.maximumf %7, %8 : vector<128x32xf32>
    %10 = arith.truncf %9 : vector<128x32xf32> to vector<128x32xbf16>
    %cst_11 = arith.constant dense<0.000000e+00> : vector<128x32xf32>
    %11 = tpu.matmul %3, %10, %cst_11 {dimension_numbers = #tpu.dot_dimension_numbers<[1], [0], [0], [1], [0, 0, 1, 1], [], []>} : vector<128x128xbf16>, vector<128x32xbf16>, vector<128x32xf32> -> vector<128x32xf32>
    %12 = arith.truncf %11 : vector<128x32xf32> to vector<128x32xbf16>
    %c0_12 = arith.constant 0 : index
    %c0_13 = arith.constant 0 : index
    %13 = vector.load %arg5[%c0_12, %c0_13] : memref<32x32xbf16, #tpu.memory_space<vmem>>, vector<32x32xbf16>
    %cst_14 = arith.constant dense<0.000000e+00> : vector<128x32xf32>
    %14 = tpu.matmul %12, %13, %cst_14 {dimension_numbers = #tpu.dot_dimension_numbers<[1], [0], [0], [1], [0, 0, 1, 1], [], []>} : vector<128x32xbf16>, vector<32x32xbf16>, vector<128x32xf32> -> vector<128x32xf32>
    %15 = arith.addf %9, %14 : vector<128x32xf32>
    %cst_15 = arith.constant 0.000000e+00 : f32
    %16 = vector.broadcast %cst_15 : f32 to vector<128x32xf32>
    %17 = arith.maximumf %15, %16 : vector<128x32xf32>
    %18 = arith.truncf %17 : vector<128x32xf32> to vector<128x32xbf16>
    %cst_16 = arith.constant dense<0.000000e+00> : vector<128x32xf32>
    %19 = tpu.matmul %3, %18, %cst_16 {dimension_numbers = #tpu.dot_dimension_numbers<[1], [0], [0], [1], [0, 0, 1, 1], [], []>} : vector<128x128xbf16>, vector<128x32xbf16>, vector<128x32xf32> -> vector<128x32xf32>
    %20 = arith.truncf %19 : vector<128x32xf32> to vector<128x32xbf16>
    %c0_17 = arith.constant 0 : index
    %c0_18 = arith.constant 0 : index
    %21 = vector.load %arg5[%c0_17, %c0_18] : memref<32x32xbf16, #tpu.memory_space<vmem>>, vector<32x32xbf16>
    %cst_19 = arith.constant dense<0.000000e+00> : vector<128x32xf32>
    %22 = tpu.matmul %20, %21, %cst_19 {dimension_numbers = #tpu.dot_dimension_numbers<[1], [0], [0], [1], [0, 0, 1, 1], [], []>} : vector<128x32xbf16>, vector<32x32xbf16>, vector<128x32xf32> -> vector<128x32xf32>
    %23 = arith.addf %9, %22 : vector<128x32xf32>
    %cst_20 = arith.constant 0.000000e+00 : f32
    %24 = vector.broadcast %cst_20 : f32 to vector<128x32xf32>
    %25 = arith.maximumf %23, %24 : vector<128x32xf32>
    %26 = arith.truncf %25 : vector<128x32xf32> to vector<128x32xbf16>
    %cst_21 = arith.constant dense<0.000000e+00> : vector<128x32xf32>
    %27 = tpu.matmul %3, %26, %cst_21 {dimension_numbers = #tpu.dot_dimension_numbers<[1], [0], [0], [1], [0, 0, 1, 1], [], []>} : vector<128x128xbf16>, vector<128x32xbf16>, vector<128x32xf32> -> vector<128x32xf32>
    %c0_22 = arith.constant 0 : index
    %c0_23 = arith.constant 0 : index
    %28 = vector.load %arg6[%c0_22, %c0_23] : memref<32x32xbf16, #tpu.memory_space<vmem>>, vector<32x32xbf16>
    %cst_24 = arith.constant dense<0.000000e+00> : vector<128x32xf32>
    %29 = tpu.matmul %1, %28, %cst_24 {dimension_numbers = #tpu.dot_dimension_numbers<[1], [0], [0], [1], [0, 0, 1, 1], [], []>} : vector<128x32xbf16>, vector<32x32xbf16>, vector<128x32xf32> -> vector<128x32xf32>
    %30 = arith.truncf %27 : vector<128x32xf32> to vector<128x32xbf16>
    %c0_25 = arith.constant 0 : index
    %c0_26 = arith.constant 0 : index
    %31 = vector.load %arg7[%c0_25, %c0_26] : memref<32x32xbf16, #tpu.memory_space<vmem>>, vector<32x32xbf16>
    %cst_27 = arith.constant dense<0.000000e+00> : vector<128x32xf32>
    %32 = tpu.matmul %30, %31, %cst_27 {dimension_numbers = #tpu.dot_dimension_numbers<[1], [0], [0], [1], [0, 0, 1, 1], [], []>} : vector<128x32xbf16>, vector<32x32xbf16>, vector<128x32xf32> -> vector<128x32xf32>
    %33 = arith.addf %29, %32 : vector<128x32xf32>
    %cst_28 = arith.constant 0.000000e+00 : f32
    %34 = vector.broadcast %cst_28 : f32 to vector<128x32xf32>
    %35 = arith.maximumf %33, %34 : vector<128x32xf32>
    %36 = arith.truncf %35 : vector<128x32xf32> to vector<128x32xbf16>
    %cst_29 = arith.constant dense<0.000000e+00> : vector<8x32xf32>
    %37 = tpu.matmul %5, %36, %cst_29 {dimension_numbers = #tpu.dot_dimension_numbers<[1], [0], [0], [1], [0, 0, 1, 1], [], []>} : vector<8x128xbf16>, vector<128x32xbf16>, vector<8x32xf32> -> vector<8x32xf32>
    %c0_30 = arith.constant 0 : index
    %c0_31 = arith.constant 0 : index
    %38 = vector.load %arg12[%c0_30, %c0_31] : memref<8x32xf32, #tpu.memory_space<vmem>>, vector<8x32xf32>
    tpu.vector_store %arg12[%c0_30, %c0_31], %37 {strides = array<i32>} : memref<8x32xf32, #tpu.memory_space<vmem>>, vector<8x32xf32>,
    %39 = arith.truncf %37 : vector<8x32xf32> to vector<8x32xbf16>
    %c0_32 = arith.constant 0 : index
    %c0_33 = arith.constant 0 : index
    %40 = vector.load %arg8[%c0_32, %c0_33] : memref<32x32xbf16, #tpu.memory_space<vmem>>, vector<32x32xbf16>
    %cst_34 = arith.constant dense<0.000000e+00> : vector<8x32xf32>
    %41 = tpu.matmul %39, %40, %cst_34 {dimension_numbers = #tpu.dot_dimension_numbers<[1], [0], [0], [1], [0, 0, 1, 1], [], []>} : vector<8x32xbf16>, vector<32x32xbf16>, vector<8x32xf32> -> vector<8x32xf32>
    %c0_35 = arith.constant 0 : index
    %c0_36 = arith.constant 0 : index
    %42 = vector.load %arg9[%c0_35, %c0_36] : memref<1x32xf32, #tpu.memory_space<vmem>>, vector<1x32xf32>
    %43 = vector.broadcast %42 : vector<1x32xf32> to vector<8x32xf32>
    %44 = arith.addf %41, %43 : vector<8x32xf32>
    %cst_37 = arith.constant 0.000000e+00 : f32
    %45 = vector.broadcast %cst_37 : f32 to vector<8x32xf32>
    %46 = arith.maximumf %44, %45 : vector<8x32xf32>
    %47 = arith.truncf %46 : vector<8x32xf32> to vector<8x32xbf16>
    %c0_38 = arith.constant 0 : index
    %c0_39 = arith.constant 0 : index
    %48 = vector.load %arg10[%c0_38, %c0_39] : memref<32x4xbf16, #tpu.memory_space<vmem>>, vector<32x4xbf16>
    %cst_40 = arith.constant dense<0.000000e+00> : vector<8x4xf32>
    %49 = tpu.matmul %47, %48, %cst_40 {dimension_numbers = #tpu.dot_dimension_numbers<[1], [0], [0], [1], [0, 0, 1, 1], [], []>} : vector<8x32xbf16>, vector<32x4xbf16>, vector<8x4xf32> -> vector<8x4xf32>
    %c0_41 = arith.constant 0 : index
    %c0_42 = arith.constant 0 : index
    %50 = vector.load %arg11[%c0_41, %c0_42] : memref<1x4xf32, #tpu.memory_space<vmem>>, vector<1x4xf32>
    %51 = vector.broadcast %50 : vector<1x4xf32> to vector<8x4xf32>
    %52 = arith.addf %49, %51 : vector<8x4xf32>
    %c0_43 = arith.constant 0 : index
    %c0_44 = arith.constant 0 : index
    %53 = vector.load %arg13[%c0_43, %c0_44] : memref<8x4xf32, #tpu.memory_space<vmem>>, vector<8x4xf32>
    tpu.vector_store %arg13[%c0_43, %c0_44], %52 {strides = array<i32>} : memref<8x4xf32, #tpu.memory_space<vmem>>, vector<8x4xf32>,
    %54 = arith.negf %52 : vector<8x4xf32>
    %55 = math.exp %54 : vector<8x4xf32>
    %cst_45 = arith.constant 1.000000e+00 : f32
    %56 = vector.broadcast %cst_45 : f32 to vector<8x4xf32>
    %57 = arith.addf %56, %55 : vector<8x4xf32>
    %58 = arith.divf %56, %57 : vector<8x4xf32>
    %c0_46 = arith.constant 0 : index
    %c0_47 = arith.constant 0 : index
    %59 = vector.load %arg14[%c0_46, %c0_47] : memref<8x4xf32, #tpu.memory_space<vmem>>, vector<8x4xf32>
    tpu.vector_store %arg14[%c0_46, %c0_47], %58 {strides = array<i32>} : memref<8x4xf32, #tpu.memory_space<vmem>>, vector<8x4xf32>,
    return
  }
  func.func @transform_0(%arg0: i32) -> (i32, i32, i32) {
    %c0_i32 = arith.constant 0 : i32
    %c0_i32_0 = arith.constant 0 : i32
    %c0_i32_1 = arith.constant 0 : i32
    return %arg0, %c0_i32, %c0_i32_0 : i32, i32, i32
  }
  func.func @transform_1(%arg0: i32) -> (i32, i32, i32) {
    %c0_i32 = arith.constant 0 : i32
    %c0_i32_0 = arith.constant 0 : i32
    %c0_i32_1 = arith.constant 0 : i32
    return %arg0, %c0_i32, %c0_i32_0 : i32, i32, i32
  }
  func.func @transform_2(%arg0: i32) -> (i32, i32, i32) {
    %c0_i32 = arith.constant 0 : i32
    %c0_i32_0 = arith.constant 0 : i32
    %c0_i32_1 = arith.constant 0 : i32
    return %arg0, %c0_i32, %c0_i32_0 : i32, i32, i32
  }
  func.func @transform_3(%arg0: i32) -> (i32, i32) {
    %c0_i32 = arith.constant 0 : i32
    %c0_i32_0 = arith.constant 0 : i32
    %c0_i32_1 = arith.constant 0 : i32
    return %c0_i32, %c0_i32_0 : i32, i32
  }
  func.func @transform_4(%arg0: i32) -> (i32, i32) {
    %c0_i32 = arith.constant 0 : i32
    %c0_i32_0 = arith.constant 0 : i32
    %c0_i32_1 = arith.constant 0 : i32
    return %c0_i32, %c0_i32_0 : i32, i32
  }
  func.func @transform_5(%arg0: i32) -> (i32, i32) {
    %c0_i32 = arith.constant 0 : i32
    %c0_i32_0 = arith.constant 0 : i32
    %c0_i32_1 = arith.constant 0 : i32
    return %c0_i32, %c0_i32_0 : i32, i32
  }
  func.func @transform_6(%arg0: i32) -> (i32, i32) {
    %c0_i32 = arith.constant 0 : i32
    %c0_i32_0 = arith.constant 0 : i32
    %c0_i32_1 = arith.constant 0 : i32
    return %c0_i32, %c0_i32_0 : i32, i32
  }
  func.func @transform_7(%arg0: i32) -> (i32, i32) {
    %c0_i32 = arith.constant 0 : i32
    %c0_i32_0 = arith.constant 0 : i32
    %c0_i32_1 = arith.constant 0 : i32
    return %c0_i32, %c0_i32_0 : i32, i32
  }
  func.func @transform_8(%arg0: i32) -> (i32, i32) {
    %c0_i32 = arith.constant 0 : i32
    %c0_i32_0 = arith.constant 0 : i32
    %c0_i32_1 = arith.constant 0 : i32
    return %c0_i32, %c0_i32_0 : i32, i32
  }
  func.func @transform_9(%arg0: i32) -> (i32, i32) {
    %c0_i32 = arith.constant 0 : i32
    %c0_i32_0 = arith.constant 0 : i32
    %c0_i32_1 = arith.constant 0 : i32
    return %c0_i32, %c0_i32_0 : i32, i32
  }
  func.func @transform_10(%arg0: i32) -> (i32, i32) {
    %c0_i32 = arith.constant 0 : i32
    %c0_i32_0 = arith.constant 0 : i32
    %c0_i32_1 = arith.constant 0 : i32
    return %c0_i32, %c0_i32_0 : i32, i32
  }
  func.func @transform_11(%arg0: i32) -> (i32, i32) {
    %c0_i32 = arith.constant 0 : i32
    %c0_i32_0 = arith.constant 0 : i32
    return %arg0, %c0_i32 : i32, i32
  }
  func.func @transform_12(%arg0: i32) -> (i32, i32) {
    %c0_i32 = arith.constant 0 : i32
    %c0_i32_0 = arith.constant 0 : i32
    return %arg0, %c0_i32 : i32, i32
  }
  func.func @transform_13(%arg0: i32) -> (i32, i32) {
    %c0_i32 = arith.constant 0 : i32
    %c0_i32_0 = arith.constant 0 : i32
    return %arg0, %c0_i32 : i32, i32
  }
}

</mosaic_0001>

<llo_original>
// kernel: tpu_custom_call.1
$region0: #{tpu_custom_call.1}
  #allocation0 [shape = 'u32[]', space=smem, size = 0x4, offset = 0x4, fixed_abs, tag = 'smem constant byte address 0x4 - core index']
  #allocation1 [shape = 'u32[144,128]{1,0:T(1,128)}', space=vmem, size = 0x12000, scoped, tag = 'internal scratch']
  %s0 = inlined_call_operand.vmem [shape: bf16[2,128,32], index: 0, kind: input, shape index: {}]
  %s1 = inlined_call_operand.vmem [shape: bf16[2,128,128], index: 1, kind: input, shape index: {}]
  %s2 = inlined_call_operand.hbm [shape: bf16[2,8,128], index: 2, kind: input, shape index: {}]
  %s3 = inlined_call_operand.vmem [shape: bf16[32,32], index: 3, kind: input, shape index: {}]
  %s4 = inlined_call_operand.vmem [shape: bf16[32,32], index: 4, kind: input, shape index: {}]
  %s5 = inlined_call_operand.vmem [shape: bf16[32,32], index: 5, kind: input, shape index: {}]
  %s6 = inlined_call_operand.hbm [shape: bf16[32,32], index: 6, kind: input, shape index: {}]
  %s7 = inlined_call_operand.hbm [shape: bf16[32,32], index: 7, kind: input, shape index: {}]
  %s8 = inlined_call_operand.vmem [shape: f32[1,32], index: 8, kind: input, shape index: {}]
  %s9 = inlined_call_operand.vmem [shape: bf16[32,4], index: 9, kind: input, shape index: {}]
  %s10 = inlined_call_operand.vmem [shape: f32[1,4], index: 10, kind: input, shape index: {}]
  %s11 = inlined_call_operand.hbm [shape: f32[16,32], index: 11, kind: output, shape index: {0}]
  %s12 = inlined_call_operand.vmem [shape: f32[16,4], index: 12, kind: output, shape index: {1}]
  %s13 = inlined_call_operand.vmem [shape: f32[16,4], index: 13, kind: output, shape index: {2}]
  %14 = xla_tuple %s11, %s12, %s13
  %s15 = sld [smem:[#allocation0]]
  $region105: #{tpu_custom_call.1} parent=0
    _
  %s17 = ssub.s32 1, %s15
  %s18 = scalar_select 0, %s17, %s15
  $region1: #{tpu_custom_call.1} parent=0
    #allocation2 [shape = 'u8[4096]{0}', space=vmem, size = 0x1000, scoped, tag = 'input window, operand 2']
    #allocation3 [shape = 's32[2]{0}', space=sflag, size = 0x8, scoped, tag = 'scoped memory for tpu_custom_call.1']
    #allocation4 [shape = 's32[2]{0}', space=sflag, size = 0x8, scoped, tag = 'scoped memory for tpu_custom_call.1']
    #allocation5 [shape = 'u8[8192]{0}', space=vmem, size = 0x2000, scoped, tag = 'input window, operand 6, single buffered']
    #allocation6 [shape = 's32[1]{0}', space=sflag, size = 0x4, scoped, tag = 'scoped memory for tpu_custom_call.1']
    #allocation7 [shape = 'u8[8192]{0}', space=vmem, size = 0x2000, scoped, tag = 'input window, operand 7, single buffered']
    #allocation8 [shape = 'u8[8192]{0}', space=vmem, size = 0x2000, scoped, tag = 'output window, operand 0']
    %19 = vsyncpa [#allocation3], 0
    %s20 = scalar_lea.sflag [#allocation3], 1
    %21 = vsyncpa %s20, 0
    %22 = vsyncpa [#allocation6], 0
    %23 = vsyncpa [#allocation4], 0
    %s24 = scalar_lea.sflag [#allocation4], 1
    %25 = vsyncpa %s24, 0
    loop: start=0, step=1, limit=4
    $region2: #{tpu_custom_call.1} parent=1 // loop_pre_header
      _
    $region3: #{tpu_custom_call.1} parent=1 // loop_header
      %s27 = sphi 0, %s31
      %p28 = scmp.ge.s32.totalorder %s27, 4
      %s37 = sphi 0, %s39
      %s40 = sphi 0, %s37
      %s41 = sphi 0, %s40
      %s57 = sphi 0, %s41
      %s63 = sphi 0, %s65
      %s66 = sphi 0, %s63
      %s67 = sphi 0, %s66
      %s83 = sphi 0, %s67
      %s89 = sphi 0, %s91
      %s92 = sphi 0, %s89
      %s93 = sphi 0, %s92
      %s109 = sphi 0, %s93
      %s113 = sphi 0, %s113
      %s115 = sphi 0, %s113
      %s116 = sphi 0, %s115
      %s130 = sphi 0, %s116
      %s134 = sphi 0, %s134
      %s136 = sphi 0, %s134
      %s137 = sphi 0, %s136
      %s151 = sphi 0, %s137
      %s155 = sphi 0, %s155
      %s157 = sphi 0, %s155
      %s158 = sphi 0, %s157
      %s172 = sphi 0, %s158
      %s176 = sphi 0, %s176
      %s178 = sphi 0, %s176
      %s179 = sphi 0, %s178
      %s193 = sphi 0, %s179
      %s197 = sphi 0, %s197
      %s199 = sphi 0, %s197
      %s200 = sphi 0, %s199
      %s214 = sphi 0, %s200
      %s218 = sphi 0, %s218
      %s220 = sphi 0, %s218
      %s221 = sphi 0, %s220
      %s235 = sphi 0, %s221
      %s239 = sphi 0, %s239
      %s241 = sphi 0, %s239
      %s242 = sphi 0, %s241
      %s256 = sphi 0, %s242
      %s260 = sphi 0, %s260
      %s262 = sphi 0, %s260
      %s263 = sphi 0, %s262
      %s277 = sphi 0, %s263
      %s283 = sphi 0, %s285
      %s286 = sphi 0, %s283
      %s287 = sphi 0, %s286
      %s303 = sphi 0, %s287
      %s309 = sphi 0, %s311
      %s312 = sphi 0, %s309
      %s313 = sphi 0, %s312
      %s329 = sphi 0, %s313
      %s335 = sphi 0, %s337
      %s338 = sphi 0, %s335
      %s339 = sphi 0, %s338
      %s355 = sphi 0, %s339
    $region4: #{tpu_custom_call.1} parent=1 // loop_header_branch
      %30 = sbr.rel (%p28) target = $region8
    $region5: #{tpu_custom_call.1} parent=1 // loop_body
      %s32 = ssub.s32 %s27, 1
      %s33 = ssub.s32 %s27, 2
      %s34 = sadd.s32 %s27, 1
      %s35 = ssub.s32 %s27, %s34
      %p36 = scmp.eq.s32.totalorder %s35, 0
      %s38 = sadd.s32 %s37, 1
      %s39 = scalar_select %p36, %s37, %s38
      %p42 = pneg %p36
      %p43 = scmp.eq.s32.totalorder %s27, 1
      %p44 = por %p42, %p43
      %p45 = scmp.ne.s32.totalorder %s37, %s40
      %p46 = scmp.eq.s32.totalorder %s27, 0
      %p47 = por %p45, %p46
      %p48 = scmp.ne.s32.totalorder %s37, %s40
      %p49 = scmp.eq.s32.totalorder %s32, 1
      %p50 = por %p48, %p49
      %p51 = scmp.ne.s32.totalorder %s40, %s41
      %p52 = scmp.eq.s32.totalorder %s32, 0
      %p53 = por %p51, %p52
      %p54 = scmp.ne.s32.totalorder %s40, %s41
      %p55 = scmp.eq.s32.totalorder %s33, 1
      %p56 = por %p54, %p55
      %p58 = scmp.ne.s32.totalorder %s41, %s57
      %p59 = scmp.eq.s32.totalorder %s33, 0
      %p60 = por %p58, %p59
      %s61 = ssub.s32 %s27, %s34
      %p62 = scmp.eq.s32.totalorder %s61, 0
      %s64 = sadd.s32 %s63, 1
      %s65 = scalar_select %p62, %s63, %s64
      %p68 = pneg %p62
      %p69 = scmp.eq.s32.totalorder %s27, 1
      %p70 = por %p68, %p69
      %p71 = scmp.ne.s32.totalorder %s63, %s66
      %p72 = scmp.eq.s32.totalorder %s27, 0
      %p73 = por %p71, %p72
      %p74 = scmp.ne.s32.totalorder %s63, %s66
      %p75 = scmp.eq.s32.totalorder %s32, 1
      %p76 = por %p74, %p75
      %p77 = scmp.ne.s32.totalorder %s66, %s67
      %p78 = scmp.eq.s32.totalorder %s32, 0
      %p79 = por %p77, %p78
      %p80 = scmp.ne.s32.totalorder %s66, %s67
      %p81 = scmp.eq.s32.totalorder %s33, 1
      %p82 = por %p80, %p81
      %p84 = scmp.ne.s32.totalorder %s67, %s83
      %p85 = scmp.eq.s32.totalorder %s33, 0
      %p86 = por %p84, %p85
      %s87 = ssub.s32 %s27, %s34
      %p88 = scmp.eq.s32.totalorder %s87, 0
      %s90 = sadd.s32 %s89, 1
      %s91 = scalar_select %p88, %s89, %s90
      %p94 = pneg %p88
      %p95 = scmp.eq.s32.totalorder %s27, 1
      %p96 = por %p94, %p95
      %p97 = scmp.ne.s32.totalorder %s89, %s92
      %p98 = scmp.eq.s32.totalorder %s27, 0
      %p99 = por %p97, %p98
      %p100 = scmp.ne.s32.totalorder %s89, %s92
      %p101 = scmp.eq.s32.totalorder %s32, 1
      %p102 = por %p100, %p101
      %p103 = scmp.ne.s32.totalorder %s92, %s93
      %p104 = scmp.eq.s32.totalorder %s32, 0
      %p105 = por %p103, %p104
      %p106 = scmp.ne.s32.totalorder %s92, %s93
      %p107 = scmp.eq.s32.totalorder %s33, 1
      %p108 = por %p106, %p107
      %p110 = scmp.ne.s32.totalorder %s93, %s109
      %p111 = scmp.eq.s32.totalorder %s33, 0
      %p112 = por %p110, %p111
      %s114 = sadd.s32 %s113, 1
      %p117 = scmp.eq.s32.totalorder %s27, 1
      %p118 = scmp.ne.s32.totalorder %s113, %s115
      %p119 = scmp.eq.s32.totalorder %s27, 0
      %p120 = por %p118, %p119
      %p121 = scmp.ne.s32.totalorder %s113, %s115
      %p122 = scmp.eq.s32.totalorder %s32, 1
      %p123 = por %p121, %p122
      %p124 = scmp.ne.s32.totalorder %s115, %s116
      %p125 = scmp.eq.s32.totalorder %s32, 0
      %p126 = por %p124, %p125
      %p127 = scmp.ne.s32.totalorder %s115, %s116
      %p128 = scmp.eq.s32.totalorder %s33, 1
      %p129 = por %p127, %p128
      %p131 = scmp.ne.s32.totalorder %s116, %s130
      %p132 = scmp.eq.s32.totalorder %s33, 0
      %p133 = por %p131, %p132
      %s135 = sadd.s32 %s134, 1
      %p138 = scmp.eq.s32.totalorder %s27, 1
      %p139 = scmp.ne.s32.totalorder %s134, %s136
      %p140 = scmp.eq.s32.totalorder %s27, 0
      %p141 = por %p139, %p140
      %p142 = scmp.ne.s32.totalorder %s134, %s136
      %p143 = scmp.eq.s32.totalorder %s32, 1
      %p144 = por %p142, %p143
      %p145 = scmp.ne.s32.totalorder %s136, %s137
      %p146 = scmp.eq.s32.totalorder %s32, 0
      %p147 = por %p145, %p146
      %p148 = scmp.ne.s32.totalorder %s136, %s137
      %p149 = scmp.eq.s32.totalorder %s33, 1
      %p150 = por %p148, %p149
      %p152 = scmp.ne.s32.totalorder %s137, %s151
      %p153 = scmp.eq.s32.totalorder %s33, 0
      %p154 = por %p152, %p153
      %s156 = sadd.s32 %s155, 1
      %p159 = scmp.eq.s32.totalorder %s27, 1
      %p160 = scmp.ne.s32.totalorder %s155, %s157
      %p161 = scmp.eq.s32.totalorder %s27, 0
      %p162 = por %p160, %p161
      %p163 = scmp.ne.s32.totalorder %s155, %s157
      %p164 = scmp.eq.s32.totalorder %s32, 1
      %p165 = por %p163, %p164
      %p166 = scmp.ne.s32.totalorder %s157, %s158
      %p167 = scmp.eq.s32.totalorder %s32, 0
      %p168 = por %p166, %p167
      %p169 = scmp.ne.s32.totalorder %s157, %s158
      %p170 = scmp.eq.s32.totalorder %s33, 1
      %p171 = por %p169, %p170
      %p173 = scmp.ne.s32.totalorder %s158, %s172
      %p174 = scmp.eq.s32.totalorder %s33, 0
      %p175 = por %p173, %p174
      %s177 = sadd.s32 %s176, 1
      %p180 = scmp.eq.s32.totalorder %s27, 1
      %p181 = scmp.ne.s32.totalorder %s176, %s178
      %p182 = scmp.eq.s32.totalorder %s27, 0
      %p183 = por %p181, %p182
      %p184 = scmp.ne.s32.totalorder %s176, %s178
      %p185 = scmp.eq.s32.totalorder %s32, 1
      %p186 = por %p184, %p185
      %p187 = scmp.ne.s32.totalorder %s178, %s179
      %p188 = scmp.eq.s32.totalorder %s32, 0
      %p189 = por %p187, %p188
      %p190 = scmp.ne.s32.totalorder %s178, %s179
      %p191 = scmp.eq.s32.totalorder %s33, 1
      %p192 = por %p190, %p191
      %p194 = scmp.ne.s32.totalorder %s179, %s193
      %p195 = scmp.eq.s32.totalorder %s33, 0
      %p196 = por %p194, %p195
      %s198 = sadd.s32 %s197, 1
      %p201 = scmp.eq.s32.totalorder %s27, 1
      %p202 = scmp.ne.s32.totalorder %s197, %s199
      %p203 = scmp.eq.s32.totalorder %s27, 0
      %p204 = por %p202, %p203
      %p205 = scmp.ne.s32.totalorder %s197, %s199
      %p206 = scmp.eq.s32.totalorder %s32, 1
      %p207 = por %p205, %p206
      %p208 = scmp.ne.s32.totalorder %s199, %s200
      %p209 = scmp.eq.s32.totalorder %s32, 0
      %p210 = por %p208, %p209
      %p211 = scmp.ne.s32.totalorder %s199, %s200
      %p212 = scmp.eq.s32.totalorder %s33, 1
      %p213 = por %p211, %p212
      %p215 = scmp.ne.s32.totalorder %s200, %s214
      %p216 = scmp.eq.s32.totalorder %s33, 0
      %p217 = por %p215, %p216
      %s219 = sadd.s32 %s218, 1
      %p222 = scmp.eq.s32.totalorder %s27, 1
      %p223 = scmp.ne.s32.totalorder %s218, %s220
      %p224 = scmp.eq.s32.totalorder %s27, 0
      %p225 = por %p223, %p224
      %p226 = scmp.ne.s32.totalorder %s218, %s220
      %p227 = scmp.eq.s32.totalorder %s32, 1
      %p228 = por %p226, %p227
      %p229 = scmp.ne.s32.totalorder %s220, %s221
      %p230 = scmp.eq.s32.totalorder %s32, 0
      %p231 = por %p229, %p230
      %p232 = scmp.ne.s32.totalorder %s220, %s221
      %p233 = scmp.eq.s32.totalorder %s33, 1
      %p234 = por %p232, %p233
      %p236 = scmp.ne.s32.totalorder %s221, %s235
      %p237 = scmp.eq.s32.totalorder %s33, 0
      %p238 = por %p236, %p237
      %s240 = sadd.s32 %s239, 1
      %p243 = scmp.eq.s32.totalorder %s27, 1
      %p244 = scmp.ne.s32.totalorder %s239, %s241
      %p245 = scmp.eq.s32.totalorder %s27, 0
      %p246 = por %p244, %p245
      %p247 = scmp.ne.s32.totalorder %s239, %s241
      %p248 = scmp.eq.s32.totalorder %s32, 1
      %p249 = por %p247, %p248
      %p250 = scmp.ne.s32.totalorder %s241, %s242
      %p251 = scmp.eq.s32.totalorder %s32, 0
      %p252 = por %p250, %p251
      %p253 = scmp.ne.s32.totalorder %s241, %s242
      %p254 = scmp.eq.s32.totalorder %s33, 1
      %p255 = por %p253, %p254
      %p257 = scmp.ne.s32.totalorder %s242, %s256
      %p258 = scmp.eq.s32.totalorder %s33, 0
      %p259 = por %p257, %p258
      %s261 = sadd.s32 %s260, 1
      %p264 = scmp.eq.s32.totalorder %s27, 1
      %p265 = scmp.ne.s32.totalorder %s260, %s262
      %p266 = scmp.eq.s32.totalorder %s27, 0
      %p267 = por %p265, %p266
      %p268 = scmp.ne.s32.totalorder %s260, %s262
      %p269 = scmp.eq.s32.totalorder %s32, 1
      %p270 = por %p268, %p269
      %p271 = scmp.ne.s32.totalorder %s262, %s263
      %p272 = scmp.eq.s32.totalorder %s32, 0
      %p273 = por %p271, %p272
      %p274 = scmp.ne.s32.totalorder %s262, %s263
      %p275 = scmp.eq.s32.totalorder %s33, 1
      %p276 = por %p274, %p275
      %p278 = scmp.ne.s32.totalorder %s263, %s277
      %p279 = scmp.eq.s32.totalorder %s33, 0
      %p280 = por %p278, %p279
      %s281 = ssub.s32 %s27, %s34
      %p282 = scmp.eq.s32.totalorder %s281, 0
      %s284 = sadd.s32 %s283, 1
      %s285 = scalar_select %p282, %s283, %s284
      %p288 = pneg %p282
      %p289 = scmp.eq.s32.totalorder %s27, 1
      %p290 = por %p288, %p289
      %p291 = scmp.ne.s32.totalorder %s283, %s286
      %p292 = scmp.eq.s32.totalorder %s27, 0
      %p293 = por %p291, %p292
      %p294 = scmp.ne.s32.totalorder %s283, %s286
      %p295 = scmp.eq.s32.totalorder %s32, 1
      %p296 = por %p294, %p295
      %p297 = scmp.ne.s32.totalorder %s286, %s287
      %p298 = scmp.eq.s32.totalorder %s32, 0
      %p299 = por %p297, %p298
      %p300 = scmp.ne.s32.totalorder %s286, %s287
      %p301 = scmp.eq.s32.totalorder %s33, 1
      %p302 = por %p300, %p301
      %p304 = scmp.ne.s32.totalorder %s287, %s303
      %p305 = scmp.eq.s32.totalorder %s33, 0
      %p306 = por %p304, %p305
      %s307 = ssub.s32 %s27, %s34
      %p308 = scmp.eq.s32.totalorder %s307, 0
      %s310 = sadd.s32 %s309, 1
      %s311 = scalar_select %p308, %s309, %s310
      %p314 = pneg %p308
      %p315 = scmp.eq.s32.totalorder %s27, 1
      %p316 = por %p314, %p315
      %p317 = scmp.ne.s32.totalorder %s309, %s312
      %p318 = scmp.eq.s32.totalorder %s27, 0
      %p319 = por %p317, %p318
      %p320 = scmp.ne.s32.totalorder %s309, %s312
      %p321 = scmp.eq.s32.totalorder %s32, 1
      %p322 = por %p320, %p321
      %p323 = scmp.ne.s32.totalorder %s312, %s313
      %p324 = scmp.eq.s32.totalorder %s32, 0
      %p325 = por %p323, %p324
      %p326 = scmp.ne.s32.totalorder %s312, %s313
      %p327 = scmp.eq.s32.totalorder %s33, 1
      %p328 = por %p326, %p327
      %p330 = scmp.ne.s32.totalorder %s313, %s329
      %p331 = scmp.eq.s32.totalorder %s33, 0
      %p332 = por %p330, %p331
      %s333 = ssub.s32 %s27, %s34
      %p334 = scmp.eq.s32.totalorder %s333, 0
      %s336 = sadd.s32 %s335, 1
      %s337 = scalar_select %p334, %s335, %s336
      %p340 = pneg %p334
      %p341 = scmp.eq.s32.totalorder %s27, 1
      %p342 = por %p340, %p341
      %p343 = scmp.ne.s32.totalorder %s335, %s338
      %p344 = scmp.eq.s32.totalorder %s27, 0
      %p345 = por %p343, %p344
      %p346 = scmp.ne.s32.totalorder %s335, %s338
      %p347 = scmp.eq.s32.totalorder %s32, 1
      %p348 = por %p346, %p347
      %p349 = scmp.ne.s32.totalorder %s338, %s339
      %p350 = scmp.eq.s32.totalorder %s32, 0
      %p351 = por %p349, %p350
      %p352 = scmp.ne.s32.totalorder %s338, %s339
      %p353 = scmp.eq.s32.totalorder %s33, 1
      %p354 = por %p352, %p353
      %p356 = scmp.ne.s32.totalorder %s339, %s355
      %p357 = scmp.eq.s32.totalorder %s33, 0
      %p358 = por %p356, %p357
      %p359 = scmp.le.s32.totalorder 1, %s27
      %p360 = scmp.lt.s32.totalorder %s27, 3
      %p361 = pnand %p359, %p360
      %p362 = pneg %p361
      // Predicated region
      $region9: #{tpu_custom_call.1} parent=5 // pred_check
        _
      $region10: #{tpu_custom_call.1} parent=5 // pred_check_branch
        %364 = sbr.rel (%p361) target = $region12
      $region11: #{tpu_custom_call.1} parent=5 // pred_region
        %s365 = ssub.s32 %s27, 1
        // Predicated region
        $region13: #{tpu_custom_call.1} parent=11 // pred_check
          %p366 = pneg %p126
        $region14: #{tpu_custom_call.1} parent=11 // pred_check_branch
          %368 = sbr.rel (%p366) target = $region16
        $region15: #{tpu_custom_call.1} parent=11 // pred_region
          _
        $region16: #{tpu_custom_call.1} parent=11 // pred_fallthru
          _
        // Predicated region
        $region17: #{tpu_custom_call.1} parent=11 // pred_check
          %p369 = pneg %p147
        $region18: #{tpu_custom_call.1} parent=11 // pred_check_branch
          %371 = sbr.rel (%p369) target = $region20
        $region19: #{tpu_custom_call.1} parent=11 // pred_region
          _
        $region20: #{tpu_custom_call.1} parent=11 // pred_fallthru
          _
        // Predicated region
        $region21: #{tpu_custom_call.1} parent=11 // pred_check
          %p372 = pneg %p168
        $region22: #{tpu_custom_call.1} parent=11 // pred_check_branch
          %374 = sbr.rel (%p372) target = $region24
        $region23: #{tpu_custom_call.1} parent=11 // pred_region
          _
        $region24: #{tpu_custom_call.1} parent=11 // pred_fallthru
          _
        // Predicated region
        $region25: #{tpu_custom_call.1} parent=11 // pred_check
          %p375 = pneg %p189
        $region26: #{tpu_custom_call.1} parent=11 // pred_check_branch
          %377 = sbr.rel (%p375) target = $region28
        $region27: #{tpu_custom_call.1} parent=11 // pred_region
          %s379 = ssub.s32 256, 256
          %380 = vsyncadd [#allocation6], %s379
          %s381 = sshll.u32 [#allocation5], 4
          %s382 = int_to_ptr.vmem [resolvable:$true] %s381
          %387 = dma.hbm_to_vmem [thread:$0]  %s6, 256, %s382, [#allocation6], 64, 64, 4
        $region28: #{tpu_custom_call.1} parent=11 // pred_fallthru
          _
        // Predicated region
        $region29: #{tpu_custom_call.1} parent=11 // pred_check
          %p388 = pneg %p210
        $region30: #{tpu_custom_call.1} parent=11 // pred_check_branch
          %390 = sbr.rel (%p388) target = $region32
        $region31: #{tpu_custom_call.1} parent=11 // pred_region
          %s392 = ssub.s32 256, 256
          %393 = vsyncadd [#allocation6], %s392
          %s394 = sshll.u32 [#allocation7], 4
          %s395 = int_to_ptr.vmem [resolvable:$true] %s394
          %400 = dma.hbm_to_vmem [thread:$0]  %s7, 256, %s395, [#allocation6], 64, 64, 4
        $region32: #{tpu_custom_call.1} parent=11 // pred_fallthru
          _
        // Predicated region
        $region33: #{tpu_custom_call.1} parent=11 // pred_check
          %p401 = pneg %p231
        $region34: #{tpu_custom_call.1} parent=11 // pred_check_branch
          %403 = sbr.rel (%p401) target = $region36
        $region35: #{tpu_custom_call.1} parent=11 // pred_region
          _
        $region36: #{tpu_custom_call.1} parent=11 // pred_fallthru
          _
        // Predicated region
        $region37: #{tpu_custom_call.1} parent=11 // pred_check
          %p404 = pneg %p252
        $region38: #{tpu_custom_call.1} parent=11 // pred_check_branch
          %406 = sbr.rel (%p404) target = $region40
        $region39: #{tpu_custom_call.1} parent=11 // pred_region
          _
        $region40: #{tpu_custom_call.1} parent=11 // pred_fallthru
          _
        // Predicated region
        $region41: #{tpu_custom_call.1} parent=11 // pred_check
          %p407 = pneg %p273
        $region42: #{tpu_custom_call.1} parent=11 // pred_check_branch
          %409 = sbr.rel (%p407) target = $region44
        $region43: #{tpu_custom_call.1} parent=11 // pred_region
          _
        $region44: #{tpu_custom_call.1} parent=11 // pred_fallthru
          _
      $region12: #{tpu_custom_call.1} parent=5 // pred_fallthru
        _
      %p410 = scmp.lt.s32.totalorder %s27, 2
      // Predicated region
      $region45: #{tpu_custom_call.1} parent=5 // pred_check
        %p411 = pneg %p410
      $region46: #{tpu_custom_call.1} parent=5 // pred_check_branch
        %413 = sbr.rel (%p411) target = $region48
      $region47: #{tpu_custom_call.1} parent=5 // pred_region
        // Predicated region
        $region49: #{tpu_custom_call.1} parent=47 // pred_check
          %p414 = pneg %p47
        $region50: #{tpu_custom_call.1} parent=47 // pred_check_branch
          %416 = sbr.rel (%p414) target = $region52
        $region51: #{tpu_custom_call.1} parent=47 // pred_region
          %p417 = scmp.lt.s32.totalorder %s27, 1
          %s418 = scalar_select %p417, %s27, 1
          %s419 = smul.addr %s418, 16
          %s420 = smul.addr %s419, 4
          %s421 = scalar_lea.vmem %s0, %s420
        $region52: #{tpu_custom_call.1} parent=47 // pred_fallthru
          _
        // Predicated region
        $region53: #{tpu_custom_call.1} parent=47 // pred_check
          %p422 = pneg %p73
        $region54: #{tpu_custom_call.1} parent=47 // pred_check_branch
          %424 = sbr.rel (%p422) target = $region56
        $region55: #{tpu_custom_call.1} parent=47 // pred_region
          %p425 = scmp.lt.s32.totalorder %s27, 1
          %s426 = scalar_select %p425, %s27, 1
          %s427 = smul.addr %s426, 16
          %s428 = smul.addr %s427, 4
          %s429 = scalar_lea.vmem %s1, %s428
        $region56: #{tpu_custom_call.1} parent=47 // pred_fallthru
          _
        // Predicated region
        $region57: #{tpu_custom_call.1} parent=47 // pred_check
          %p430 = pneg %p99
        $region58: #{tpu_custom_call.1} parent=47 // pred_check_branch
          %432 = sbr.rel (%p430) target = $region60
        $region59: #{tpu_custom_call.1} parent=47 // pred_region
          %s433 = sand.u32 %s89, 1
          %s434 = scalar_lea.sflag [#allocation3], %s433
          %s435 = sand.u32 %s89, 1
          %s436 = smul.addr %s435, 4
          %s437 = scalar_lea.vmem [#allocation2], %s436
          %s439 = ssub.s32 64, 64
          %440 = vsyncadd %s434, %s439
          %s441 = smul.addr %s27, 64
          %s442 = scalar_lea.hbm %s2, %s441
          %s444 = sshll.u32 %s437, 4
          %s445 = int_to_ptr.vmem [resolvable:$true] %s444
          %447 = dma.hbm_to_vmem [thread:$0]  %s442, 64, %s445, %s434
        $region60: #{tpu_custom_call.1} parent=47 // pred_fallthru
          _
      $region48: #{tpu_custom_call.1} parent=5 // pred_fallthru
        _
      %p448 = scmp.le.s32.totalorder 1, %s27
      %p449 = scmp.lt.s32.totalorder %s27, 3
      %p450 = pnand %p448, %p449
      %p451 = pneg %p450
      // Predicated region
      $region61: #{tpu_custom_call.1} parent=5 // pred_check
        _
      $region62: #{tpu_custom_call.1} parent=5 // pred_check_branch
        %453 = sbr.rel (%p450) target = $region64
      $region63: #{tpu_custom_call.1} parent=5 // pred_region
        %s454 = ssub.s32 %s27, 1
        %s455 = sand.u32 %s92, 1
        %s456 = scalar_lea.sflag [#allocation3], %s455
        %s457 = sand.u32 %s92, 1
        %s458 = smul.addr %s457, 4
        %s459 = scalar_lea.vmem [#allocation2], %s458
        // Predicated region
        $region65: #{tpu_custom_call.1} parent=63 // pred_check
          %p460 = pneg %p105
        $region66: #{tpu_custom_call.1} parent=63 // pred_check_branch
          %462 = sbr.rel (%p460) target = $region68
        $region67: #{tpu_custom_call.1} parent=63 // pred_region
          %463 = dma.done %s456, 64
        $region68: #{tpu_custom_call.1} parent=63 // pred_fallthru
          _
        // Predicated region
        $region69: #{tpu_custom_call.1} parent=63 // pred_check
          %p464 = pneg %p189
        $region70: #{tpu_custom_call.1} parent=63 // pred_check_branch
          %466 = sbr.rel (%p464) target = $region72
        $region71: #{tpu_custom_call.1} parent=63 // pred_region
          %467 = dma.done [#allocation6], 256
        $region72: #{tpu_custom_call.1} parent=63 // pred_fallthru
          _
        // Predicated region
        $region73: #{tpu_custom_call.1} parent=63 // pred_check
          %p468 = pneg %p210
        $region74: #{tpu_custom_call.1} parent=63 // pred_check_branch
          %470 = sbr.rel (%p468) target = $region76
        $region75: #{tpu_custom_call.1} parent=63 // pred_region
          %471 = dma.done [#allocation6], 256
        $region76: #{tpu_custom_call.1} parent=63 // pred_fallthru
          _
        %p472 = scmp.lt.s32.totalorder %s32, 1
        %s473 = scalar_select %p472, %s32, 1
        %s474 = smul.addr %s473, 16
        %s475 = smul.addr %s474, 4
        %s476 = scalar_lea.vmem %s0, %s475
        %p477 = pneg %p53
        %p478 = pneg %p50
        %p479 = scmp.lt.s32.totalorder %s32, 1
        %s480 = scalar_select %p479, %s32, 1
        %s481 = smul.addr %s480, 16
        %s482 = smul.addr %s481, 4
        %s483 = scalar_lea.vmem %s1, %s482
        %p484 = pneg %p79
        %p485 = pneg %p76
        %s486 = sand.u32 %s92, 1
        %s487 = scalar_lea.sflag [#allocation3], %s486
        %s488 = sand.u32 %s92, 1
        %s489 = smul.addr %s488, 4
        %s490 = scalar_lea.vmem [#allocation2], %s489
        %p491 = pneg %p105
        %p492 = pneg %p102
        %p493 = pneg %p126
        %p494 = pneg %p123
        %p495 = pneg %p147
        %p496 = pneg %p144
        %p497 = pneg %p168
        %p498 = pneg %p165
        %p499 = pneg %p189
        %p500 = pneg %p186
        %p501 = pneg %p210
        %p502 = pneg %p207
        %p503 = pneg %p231
        %p504 = pneg %p228
        %p505 = pneg %p252
        %p506 = pneg %p249
        %p507 = pneg %p273
        %p508 = pneg %p270
        %p509 = pneg %p299
        %p510 = pneg %p296
        %s511 = sand.u32 %s286, 1
        %s512 = scalar_lea.sflag [#allocation4], %s511
        %s513 = sand.u32 %s286, 1
        %s514 = smul.addr %s513, 8
        %s515 = scalar_lea.vmem [#allocation8], %s514
        %p516 = pneg %p325
        %p517 = pneg %p322
        %p518 = scmp.lt.s32.totalorder %s32, 1
        %s519 = scalar_select %p518, %s32, 1
        %s520 = smul.addr %s519, 8
        %s521 = scalar_lea.vmem %s12, %s520
        %p522 = pneg %p351
        %p523 = pneg %p348
        %p524 = scmp.lt.s32.totalorder %s32, 1
        %s525 = scalar_select %p524, %s32, 1
        %s526 = smul.addr %s525, 8
        %s527 = scalar_lea.vmem %s13, %s526
        %p528 = scmp.lt.s32.totalorder %s32, 1
        %s529 = scalar_select %p528, %s32, 1
        %s530 = smul.addr %s529, 16
        %s531 = smul.addr %s530, 4
        %s532 = scalar_lea.vmem %s0, %s531
        %p533 = scmp.lt.s32.totalorder %s32, 1
        %s534 = scalar_select %p533, %s32, 1
        %s535 = smul.addr %s534, 16
        %s536 = smul.addr %s535, 4
        %s537 = scalar_lea.vmem %s1, %s536
        %p538 = scmp.lt.s32.totalorder %s32, 1
        %s539 = scalar_select %p538, %s32, 1
        %s540 = smul.addr %s539, 8
        %s541 = scalar_lea.vmem %s12, %s540
        %p542 = scmp.lt.s32.totalorder %s32, 1
        %s543 = scalar_select %p542, %s32, 1
        %s544 = smul.addr %s543, 8
        %s545 = scalar_lea.vmem %s13, %s544
        %v547 = vld [vmem:[%s532] sm:$0xf]
        %v548 = vld [vmem:[%s532 + $0x4] sm:$0xf]
        %v549 = vld [vmem:[%s532 + $0x8] sm:$0xf]
        %v550 = vld [vmem:[%s532 + $0xc] sm:$0xf]
        %v551 = vld [vmem:[%s532 + $0x10] sm:$0xf]
        %v552 = vld [vmem:[%s532 + $0x14] sm:$0xf]
        %v553 = vld [vmem:[%s532 + $0x18] sm:$0xf]
        %v554 = vld [vmem:[%s532 + $0x1c] sm:$0xf]
        %v555 = vld [vmem:[%s532 + $0x20] sm:$0xf]
        %v556 = vld [vmem:[%s532 + $0x24] sm:$0xf]
        %v557 = vld [vmem:[%s532 + $0x28] sm:$0xf]
        %v558 = vld [vmem:[%s532 + $0x2c] sm:$0xf]
        %v559 = vld [vmem:[%s532 + $0x30] sm:$0xf]
        %v560 = vld [vmem:[%s532 + $0x34] sm:$0xf]
        %v561 = vld [vmem:[%s532 + $0x38] sm:$0xf]
        %v562 = vld [vmem:[%s532 + $0x3c] sm:$0xf]
        %v563 = vld [vmem:[%s537] sm:$0xf]
        %v564 = vld [vmem:[%s537 + $0x4] sm:$0xf]
        %v565 = vld [vmem:[%s537 + $0x8] sm:$0xf]
        %v566 = vld [vmem:[%s537 + $0xc] sm:$0xf]
        %v567 = vld [vmem:[%s537 + $0x10] sm:$0xf]
        %v568 = vld [vmem:[%s537 + $0x14] sm:$0xf]
        %v569 = vld [vmem:[%s537 + $0x18] sm:$0xf]
        %v570 = vld [vmem:[%s537 + $0x1c] sm:$0xf]
        %v571 = vld [vmem:[%s537 + $0x20] sm:$0xf]
        %v572 = vld [vmem:[%s537 + $0x24] sm:$0xf]
        %v573 = vld [vmem:[%s537 + $0x28] sm:$0xf]
        %v574 = vld [vmem:[%s537 + $0x2c] sm:$0xf]
        %v575 = vld [vmem:[%s537 + $0x30] sm:$0xf]
        %v576 = vld [vmem:[%s537 + $0x34] sm:$0xf]
        %v577 = vld [vmem:[%s537 + $0x38] sm:$0xf]
        %v578 = vld [vmem:[%s537 + $0x3c] sm:$0xf]
        %v579 = vld [vmem:[%s459] sm:$0xf]
        %v580 = vld [vmem:[%s3] sm:$0xf]
        %v581 = vld [vmem:[%s3 + $0x4] sm:$0xf]
        %v582 = vld [vmem:[%s3 + $0x8] sm:$0xf]
        %v583 = vld [vmem:[%s3 + $0xc] sm:$0xf]
        %v600 = vunpack.c.l.b16 %v547
        %v601 = vunpack.c.l.b16 %v548
        %v602 = vunpack.c.l.b16 %v549
        %v603 = vunpack.c.l.b16 %v550
        %v604 = vunpack.c.l.b16 %v551
        %v605 = vunpack.c.l.b16 %v552
        %v606 = vunpack.c.l.b16 %v553
        %v607 = vunpack.c.l.b16 %v554
        %v608 = vunpack.c.l.b16 %v555
        %v609 = vunpack.c.l.b16 %v556
        %v610 = vunpack.c.l.b16 %v557
        %v611 = vunpack.c.l.b16 %v558
        %v612 = vunpack.c.l.b16 %v559
        %v613 = vunpack.c.l.b16 %v560
        %v614 = vunpack.c.l.b16 %v561
        %v615 = vunpack.c.l.b16 %v562
        %v616 = vpack.c.b16 %v601, %v600
        %v617 = vpack.c.b16 %v603, %v602
        %v618 = vpack.c.b16 %v605, %v604
        %v619 = vpack.c.b16 %v607, %v606
        %v620 = vpack.c.b16 %v609, %v608
        %v621 = vpack.c.b16 %v611, %v610
        %v622 = vpack.c.b16 %v613, %v612
        %v623 = vpack.c.b16 %v615, %v614
        %v628 = vunpack.c.l.b16 %v580
        %v629 = vunpack.c.l.b16 %v581
        %v630 = vunpack.c.l.b16 %v582
        %v631 = vunpack.c.l.b16 %v583
        %v632 = vpack.c.b16 %v629, %v628
        %v633 = vpack.c.b16 %v631, %v630
        %vm636 = vcmask 261120
        %v638 = vsel %vm636, %v616, 0
        %v641 = vsel %vm636, %v617, 0
        %v644 = vsel %vm636, %v618, 0
        %v647 = vsel %vm636, %v619, 0
        %v650 = vsel %vm636, %v620, 0
        %v653 = vsel %vm636, %v621, 0
        %v656 = vsel %vm636, %v622, 0
        %v659 = vsel %vm636, %v623, 0
        %661 = vmatprep.subr.bf16.mxu0 0
        %662 = vmatpush1.bf16.msra.mxu0 0
        %663 = vmatprep.subr.bf16.mxu0 0
        %664 = vmatpush1.bf16.msra.mxu0 0
        %665 = vmatprep.subr.bf16.mxu0 0
        %666 = vmatpush1.bf16.msra.mxu0 0
        %667 = vmatprep.subr.bf16.mxu0 0
        %668 = vmatpush1.bf16.msra.mxu0 0
        %669 = vmatprep.subr.bf16.mxu0 0
        %670 = vmatpush1.bf16.msra.mxu0 0
        %671 = vmatprep.subr.bf16.mxu0 0
        %672 = vmatpush1.bf16.msra.mxu0 0
        %673 = vmatprep.subr.bf16.mxu0 0
        %674 = vmatpush1.bf16.msra.mxu0 %v633
        %675 = vmatprep.subr.bf16.mxu0 0
        %676 = vmatpush1.bf16.msra.mxu0 %v632
        %677 = vmatprep.subr.bf16.mxu0 0
        %678 = vmatpush2.bf16.msra.mxu0 0
        %679 = vmatprep.subr.bf16.mxu0 0
        %680 = vmatpush2.bf16.msra.mxu0 0
        %681 = vmatprep.subr.bf16.mxu0 0
        %682 = vmatpush2.bf16.msra.mxu0 0
        %683 = vmatprep.subr.bf16.mxu0 0
        %684 = vmatpush2.bf16.msra.mxu0 0
        %685 = vmatprep.subr.bf16.mxu0 0
        %686 = vmatpush2.bf16.msra.mxu0 0
        %687 = vmatprep.subr.bf16.mxu0 0
        %688 = vmatpush2.bf16.msra.mxu0 0
        %689 = vmatprep.subr.bf16.mxu0 0
        %690 = vmatpush2.bf16.msra.mxu0 0
        %691 = vmatprep.subr.bf16.mxu0 0
        %692 = vmatpush2.bf16.msra.mxu0 0
        %693 = vmatprep.mubr.bf16.mxu0 0
        %694 = vmatmul.mubr.bf16.gmra.mxu0 %v638
        %v695 = vpop.f32.mrf.mxu0
        %v696 = vadd.f32 0.0, %v695
        %v697 = vpop.f32.mrf.mxu0
        %v698 = vpop.f32.mrf.mxu0
        %v699 = vadd.f32 0.0, %v698
        %v700 = vpop.f32.mrf.mxu0
        %701 = vmatprep.mubr.bf16.mxu0 0
        %702 = vmatmul.mubr.bf16.gmra.mxu0 %v641
        %v703 = vpop.f32.mrf.mxu0
        %v704 = vadd.f32 0.0, %v703
        %v705 = vpop.f32.mrf.mxu0
        %v706 = vpop.f32.mrf.mxu0
        %v707 = vadd.f32 0.0, %v706
        %v708 = vpop.f32.mrf.mxu0
        %709 = vmatprep.mubr.bf16.mxu0 0
        %710 = vmatmul.mubr.bf16.gmra.mxu0 %v644
        %v711 = vpop.f32.mrf.mxu0
        %v712 = vadd.f32 0.0, %v711
        %v713 = vpop.f32.mrf.mxu0
        %v714 = vpop.f32.mrf.mxu0
        %v715 = vadd.f32 0.0, %v714
        %v716 = vpop.f32.mrf.mxu0
        %717 = vmatprep.mubr.bf16.mxu0 0
        %718 = vmatmul.mubr.bf16.gmra.mxu0 %v647
        %v719 = vpop.f32.mrf.mxu0
        %v720 = vadd.f32 0.0, %v719
        %v721 = vpop.f32.mrf.mxu0
        %v722 = vpop.f32.mrf.mxu0
        %v723 = vadd.f32 0.0, %v722
        %v724 = vpop.f32.mrf.mxu0
        %725 = vmatprep.mubr.bf16.mxu0 0
        %726 = vmatmul.mubr.bf16.gmra.mxu0 %v650
        %v727 = vpop.f32.mrf.mxu0
        %v728 = vadd.f32 0.0, %v727
        %v729 = vpop.f32.mrf.mxu0
        %v730 = vpop.f32.mrf.mxu0
        %v731 = vadd.f32 0.0, %v730
        %v732 = vpop.f32.mrf.mxu0
        %733 = vmatprep.mubr.bf16.mxu0 0
        %734 = vmatmul.mubr.bf16.gmra.mxu0 %v653
        %v735 = vpop.f32.mrf.mxu0
        %v736 = vadd.f32 0.0, %v735
        %v737 = vpop.f32.mrf.mxu0
        %v738 = vpop.f32.mrf.mxu0
        %v739 = vadd.f32 0.0, %v738
        %v740 = vpop.f32.mrf.mxu0
        %741 = vmatprep.mubr.bf16.mxu0 0
        %742 = vmatmul.mubr.bf16.gmra.mxu0 %v656
        %v743 = vpop.f32.mrf.mxu0
        %v744 = vadd.f32 0.0, %v743
        %v745 = vpop.f32.mrf.mxu0
        %v746 = vpop.f32.mrf.mxu0
        %v747 = vadd.f32 0.0, %v746
        %v748 = vpop.f32.mrf.mxu0
        %749 = vmatprep.mubr.bf16.mxu0 0
        %750 = vmatmul.mubr.bf16.gmra.mxu0 %v659
        %v751 = vpop.f32.mrf.mxu0
        %v752 = vadd.f32 0.0, %v751
        %v753 = vpop.f32.mrf.mxu0
        %v754 = vpop.f32.mrf.mxu0
        %v755 = vadd.f32 0.0, %v754
        %v756 = vpop.f32.mrf.mxu0
        %757 = vdwg.mxu0
        %v758 = vmax.f32 %v696, 0.0
        %v759 = vmax.f32 %v699, 0.0
        %v760 = vmax.f32 %v704, 0.0
        %v761 = vmax.f32 %v707, 0.0
        %v762 = vmax.f32 %v712, 0.0
        %v763 = vmax.f32 %v715, 0.0
        %v764 = vmax.f32 %v720, 0.0
        %v765 = vmax.f32 %v723, 0.0
        %v766 = vmax.f32 %v728, 0.0
        %v767 = vmax.f32 %v731, 0.0
        %v768 = vmax.f32 %v736, 0.0
        %v769 = vmax.f32 %v739, 0.0
        %v770 = vmax.f32 %v744, 0.0
        %v771 = vmax.f32 %v747, 0.0
        %v772 = vmax.f32 %v752, 0.0
        %v773 = vmax.f32 %v755, 0.0
        %v774 = vpack.c.bf16 %v759, %v758
        %v775 = vpack.c.bf16 %v761, %v760
        %v776 = vpack.c.bf16 %v763, %v762
        %v777 = vpack.c.bf16 %v765, %v764
        %v778 = vpack.c.bf16 %v767, %v766
        %v779 = vpack.c.bf16 %v769, %v768
        %v780 = vpack.c.bf16 %v771, %v770
        %v781 = vpack.c.bf16 %v773, %v772
        %v798 = vunpack.c.l.b16 %v563
        %v799 = vunpack.c.l.b16 %v564
        %v800 = vunpack.c.l.b16 %v565
        %v801 = vunpack.c.l.b16 %v566
        %v802 = vunpack.c.l.b16 %v567
        %v803 = vunpack.c.l.b16 %v568
        %v804 = vunpack.c.l.b16 %v569
        %v805 = vunpack.c.l.b16 %v570
        %v806 = vunpack.c.l.b16 %v571
        %v807 = vunpack.c.l.b16 %v572
        %v808 = vunpack.c.l.b16 %v573
        %v809 = vunpack.c.l.b16 %v574
        %v810 = vunpack.c.l.b16 %v575
        %v811 = vunpack.c.l.b16 %v576
        %v812 = vunpack.c.l.b16 %v577
        %v813 = vunpack.c.l.b16 %v578
        %v814 = vpack.c.b16 %v799, %v798
        %v815 = vpack.c.b16 %v801, %v800
        %v816 = vpack.c.b16 %v803, %v802
        %v817 = vpack.c.b16 %v805, %v804
        %v818 = vpack.c.b16 %v807, %v806
        %v819 = vpack.c.b16 %v809, %v808
        %v820 = vpack.c.b16 %v811, %v810
        %v821 = vpack.c.b16 %v813, %v812
        %830 = vmatprep.subr.bf16.mxu0 0
        %831 = vmatpush1.bf16.msra.mxu0 %v781
        %832 = vmatprep.subr.bf16.mxu0 0
        %833 = vmatpush1.bf16.msra.mxu0 %v780
        %834 = vmatprep.subr.bf16.mxu0 0
        %835 = vmatpush1.bf16.msra.mxu0 %v779
        %836 = vmatprep.subr.bf16.mxu0 0
        %837 = vmatpush1.bf16.msra.mxu0 %v778
        %838 = vmatprep.subr.bf16.mxu0 0
        %839 = vmatpush1.bf16.msra.mxu0 %v777
        %840 = vmatprep.subr.bf16.mxu0 0
        %841 = vmatpush1.bf16.msra.mxu0 %v776
        %842 = vmatprep.subr.bf16.mxu0 0
        %843 = vmatpush1.bf16.msra.mxu0 %v775
        %844 = vmatprep.subr.bf16.mxu0 0
        %845 = vmatpush1.bf16.msra.mxu0 %v774
        %846 = vmatprep.subr.bf16.mxu0 0
        %847 = vmatpush2.bf16.msra.mxu0 0
        %848 = vmatprep.subr.bf16.mxu0 0
        %849 = vmatpush2.bf16.msra.mxu0 0
        %850 = vmatprep.subr.bf16.mxu0 0
        %851 = vmatpush2.bf16.msra.mxu0 0
        %852 = vmatprep.subr.bf16.mxu0 0
        %853 = vmatpush2.bf16.msra.mxu0 0
        %854 = vmatprep.subr.bf16.mxu0 0
        %855 = vmatpush2.bf16.msra.mxu0 0
        %856 = vmatprep.subr.bf16.mxu0 0
        %857 = vmatpush2.bf16.msra.mxu0 0
        %858 = vmatprep.subr.bf16.mxu0 0
        %859 = vmatpush2.bf16.msra.mxu0 0
        %860 = vmatprep.subr.bf16.mxu0 0
        %861 = vmatpush2.bf16.msra.mxu0 0
        %862 = vmatprep.mubr.bf16.mxu0 0
        %863 = vmatmul.mubr.bf16.gmra.mxu0 %v814
        %v864 = vpop.f32.mrf.mxu0
        %v865 = vadd.f32 0.0, %v864
        %v866 = vpop.f32.mrf.mxu0
        %v867 = vpop.f32.mrf.mxu0
        %v868 = vadd.f32 0.0, %v867
        %v869 = vpop.f32.mrf.mxu0
        %870 = vmatprep.mubr.bf16.mxu0 0
        %871 = vmatmul.mubr.bf16.gmra.mxu0 %v815
        %v872 = vpop.f32.mrf.mxu0
        %v873 = vadd.f32 0.0, %v872
        %v874 = vpop.f32.mrf.mxu0
        %v875 = vpop.f32.mrf.mxu0
        %v876 = vadd.f32 0.0, %v875
        %v877 = vpop.f32.mrf.mxu0
        %878 = vmatprep.mubr.bf16.mxu0 0
        %879 = vmatmul.mubr.bf16.gmra.mxu0 %v816
        %v880 = vpop.f32.mrf.mxu0
        %v881 = vadd.f32 0.0, %v880
        %v882 = vpop.f32.mrf.mxu0
        %v883 = vpop.f32.mrf.mxu0
        %v884 = vadd.f32 0.0, %v883
        %v885 = vpop.f32.mrf.mxu0
        %886 = vmatprep.mubr.bf16.mxu0 0
        %887 = vmatmul.mubr.bf16.gmra.mxu0 %v817
        %v888 = vpop.f32.mrf.mxu0
        %v889 = vadd.f32 0.0, %v888
        %v890 = vpop.f32.mrf.mxu0
        %v891 = vpop.f32.mrf.mxu0
        %v892 = vadd.f32 0.0, %v891
        %v893 = vpop.f32.mrf.mxu0
        %894 = vmatprep.mubr.bf16.mxu0 0
        %895 = vmatmul.mubr.bf16.gmra.mxu0 %v818
        %v896 = vpop.f32.mrf.mxu0
        %v897 = vadd.f32 0.0, %v896
        %v898 = vpop.f32.mrf.mxu0
        %v899 = vpop.f32.mrf.mxu0
        %v900 = vadd.f32 0.0, %v899
        %v901 = vpop.f32.mrf.mxu0
        %902 = vmatprep.mubr.bf16.mxu0 0
        %903 = vmatmul.mubr.bf16.gmra.mxu0 %v819
        %v904 = vpop.f32.mrf.mxu0
        %v905 = vadd.f32 0.0, %v904
        %v906 = vpop.f32.mrf.mxu0
        %v907 = vpop.f32.mrf.mxu0
        %v908 = vadd.f32 0.0, %v907
        %v909 = vpop.f32.mrf.mxu0
        %910 = vmatprep.mubr.bf16.mxu0 0
        %911 = vmatmul.mubr.bf16.gmra.mxu0 %v820
        %v912 = vpop.f32.mrf.mxu0
        %v913 = vadd.f32 0.0, %v912
        %v914 = vpop.f32.mrf.mxu0
        %v915 = vpop.f32.mrf.mxu0
        %v916 = vadd.f32 0.0, %v915
        %v917 = vpop.f32.mrf.mxu0
        %918 = vmatprep.mubr.bf16.mxu0 0
        %919 = vmatmul.mubr.bf16.gmra.mxu0 %v821
        %v920 = vpop.f32.mrf.mxu0
        %v921 = vadd.f32 0.0, %v920
        %v922 = vpop.f32.mrf.mxu0
        %v923 = vpop.f32.mrf.mxu0
        %v924 = vadd.f32 0.0, %v923
        %v925 = vpop.f32.mrf.mxu0
        %926 = vdwg.mxu0
        %v927 = vpack.c.bf16 %v868, %v865
        %v928 = vpack.c.bf16 %v876, %v873
        %v929 = vpack.c.bf16 %v884, %v881
        %v930 = vpack.c.bf16 %v892, %v889
        %v931 = vpack.c.bf16 %v900, %v897
        %v932 = vpack.c.bf16 %v908, %v905
        %v933 = vpack.c.bf16 %v916, %v913
        %v934 = vpack.c.bf16 %v924, %v921
        %v935 = vld [vmem:[%s4] sm:$0xf]
        %v936 = vld [vmem:[%s4 + $0x4] sm:$0xf]
        %v937 = vld [vmem:[%s4 + $0x8] sm:$0xf]
        %v938 = vld [vmem:[%s4 + $0xc] sm:$0xf]
        %v943 = vunpack.c.l.b16 %v935
        %v944 = vunpack.c.l.b16 %v936
        %v945 = vunpack.c.l.b16 %v937
        %v946 = vunpack.c.l.b16 %v938
        %v947 = vpack.c.b16 %v944, %v943
        %v948 = vpack.c.b16 %v946, %v945
        %v952 = vsel %vm636, %v927, 0
        %v955 = vsel %vm636, %v928, 0
        %v958 = vsel %vm636, %v929, 0
        %v961 = vsel %vm636, %v930, 0
        %v964 = vsel %vm636, %v931, 0
        %v967 = vsel %vm636, %v932, 0
        %v970 = vsel %vm636, %v933, 0
        %v973 = vsel %vm636, %v934, 0
        %975 = vmatprep.subr.bf16.mxu0 0
        %976 = vmatpush1.bf16.msra.mxu0 0
        %977 = vmatprep.subr.bf16.mxu0 0
        %978 = vmatpush1.bf16.msra.mxu0 0
        %979 = vmatprep.subr.bf16.mxu0 0
        %980 = vmatpush1.bf16.msra.mxu0 0
        %981 = vmatprep.subr.bf16.mxu0 0
        %982 = vmatpush1.bf16.msra.mxu0 0
        %983 = vmatprep.subr.bf16.mxu0 0
        %984 = vmatpush1.bf16.msra.mxu0 0
        %985 = vmatprep.subr.bf16.mxu0 0
        %986 = vmatpush1.bf16.msra.mxu0 0
        %987 = vmatprep.subr.bf16.mxu0 0
        %988 = vmatpush1.bf16.msra.mxu0 %v948
        %989 = vmatprep.subr.bf16.mxu0 0
        %990 = vmatpush1.bf16.msra.mxu0 %v947
        %991 = vmatprep.subr.bf16.mxu0 0
        %992 = vmatpush2.bf16.msra.mxu0 0
        %993 = vmatprep.subr.bf16.mxu0 0
        %994 = vmatpush2.bf16.msra.mxu0 0
        %995 = vmatprep.subr.bf16.mxu0 0
        %996 = vmatpush2.bf16.msra.mxu0 0
        %997 = vmatprep.subr.bf16.mxu0 0
        %998 = vmatpush2.bf16.msra.mxu0 0
        %999 = vmatprep.subr.bf16.mxu0 0
        %1000 = vmatpush2.bf16.msra.mxu0 0
        %1001 = vmatprep.subr.bf16.mxu0 0
        %1002 = vmatpush2.bf16.msra.mxu0 0
        %1003 = vmatprep.subr.bf16.mxu0 0
        %1004 = vmatpush2.bf16.msra.mxu0 0
        %1005 = vmatprep.subr.bf16.mxu0 0
        %1006 = vmatpush2.bf16.msra.mxu0 0
        %1007 = vmatprep.mubr.bf16.mxu0 0
        %1008 = vmatmul.mubr.bf16.gmra.mxu0 %v952
        %v1009 = vpop.f32.mrf.mxu0
        %v1010 = vadd.f32 0.0, %v1009
        %v1011 = vpop.f32.mrf.mxu0
        %v1012 = vpop.f32.mrf.mxu0
        %v1013 = vadd.f32 0.0, %v1012
        %v1014 = vpop.f32.mrf.mxu0
        %1015 = vmatprep.mubr.bf16.mxu0 0
        %1016 = vmatmul.mubr.bf16.gmra.mxu0 %v955
        %v1017 = vpop.f32.mrf.mxu0
        %v1018 = vadd.f32 0.0, %v1017
        %v1019 = vpop.f32.mrf.mxu0
        %v1020 = vpop.f32.mrf.mxu0
        %v1021 = vadd.f32 0.0, %v1020
        %v1022 = vpop.f32.mrf.mxu0
        %1023 = vmatprep.mubr.bf16.mxu0 0
        %1024 = vmatmul.mubr.bf16.gmra.mxu0 %v958
        %v1025 = vpop.f32.mrf.mxu0
        %v1026 = vadd.f32 0.0, %v1025
        %v1027 = vpop.f32.mrf.mxu0
        %v1028 = vpop.f32.mrf.mxu0
        %v1029 = vadd.f32 0.0, %v1028
        %v1030 = vpop.f32.mrf.mxu0
        %1031 = vmatprep.mubr.bf16.mxu0 0
        %1032 = vmatmul.mubr.bf16.gmra.mxu0 %v961
        %v1033 = vpop.f32.mrf.mxu0
        %v1034 = vadd.f32 0.0, %v1033
        %v1035 = vpop.f32.mrf.mxu0
        %v1036 = vpop.f32.mrf.mxu0
        %v1037 = vadd.f32 0.0, %v1036
        %v1038 = vpop.f32.mrf.mxu0
        %1039 = vmatprep.mubr.bf16.mxu0 0
        %1040 = vmatmul.mubr.bf16.gmra.mxu0 %v964
        %v1041 = vpop.f32.mrf.mxu0
        %v1042 = vadd.f32 0.0, %v1041
        %v1043 = vpop.f32.mrf.mxu0
        %v1044 = vpop.f32.mrf.mxu0
        %v1045 = vadd.f32 0.0, %v1044
        %v1046 = vpop.f32.mrf.mxu0
        %1047 = vmatprep.mubr.bf16.mxu0 0
        %1048 = vmatmul.mubr.bf16.gmra.mxu0 %v967
        %v1049 = vpop.f32.mrf.mxu0
        %v1050 = vadd.f32 0.0, %v1049
        %v1051 = vpop.f32.mrf.mxu0
        %v1052 = vpop.f32.mrf.mxu0
        %v1053 = vadd.f32 0.0, %v1052
        %v1054 = vpop.f32.mrf.mxu0
        %1055 = vmatprep.mubr.bf16.mxu0 0
        %1056 = vmatmul.mubr.bf16.gmra.mxu0 %v970
        %v1057 = vpop.f32.mrf.mxu0
        %v1058 = vadd.f32 0.0, %v1057
        %v1059 = vpop.f32.mrf.mxu0
        %v1060 = vpop.f32.mrf.mxu0
        %v1061 = vadd.f32 0.0, %v1060
        %v1062 = vpop.f32.mrf.mxu0
        %1063 = vmatprep.mubr.bf16.mxu0 0
        %1064 = vmatmul.mubr.bf16.gmra.mxu0 %v973
        %v1065 = vpop.f32.mrf.mxu0
        %v1066 = vadd.f32 0.0, %v1065
        %v1067 = vpop.f32.mrf.mxu0
        %v1068 = vpop.f32.mrf.mxu0
        %v1069 = vadd.f32 0.0, %v1068
        %v1070 = vpop.f32.mrf.mxu0
        %1071 = vdwg.mxu0
        %v1072 = vadd.f32 %v758, %v1010
        %v1073 = vadd.f32 %v759, %v1013
        %v1074 = vadd.f32 %v760, %v1018
        %v1075 = vadd.f32 %v761, %v1021
        %v1076 = vadd.f32 %v762, %v1026
        %v1077 = vadd.f32 %v763, %v1029
        %v1078 = vadd.f32 %v764, %v1034
        %v1079 = vadd.f32 %v765, %v1037
        %v1080 = vadd.f32 %v766, %v1042
        %v1081 = vadd.f32 %v767, %v1045
        %v1082 = vadd.f32 %v768, %v1050
        %v1083 = vadd.f32 %v769, %v1053
        %v1084 = vadd.f32 %v770, %v1058
        %v1085 = vadd.f32 %v771, %v1061
        %v1086 = vadd.f32 %v772, %v1066
        %v1087 = vadd.f32 %v773, %v1069
        %v1088 = vmax.f32 %v1072, 0.0
        %v1089 = vmax.f32 %v1073, 0.0
        %v1090 = vmax.f32 %v1074, 0.0
        %v1091 = vmax.f32 %v1075, 0.0
        %v1092 = vmax.f32 %v1076, 0.0
        %v1093 = vmax.f32 %v1077, 0.0
        %v1094 = vmax.f32 %v1078, 0.0
        %v1095 = vmax.f32 %v1079, 0.0
        %v1096 = vmax.f32 %v1080, 0.0
        %v1097 = vmax.f32 %v1081, 0.0
        %v1098 = vmax.f32 %v1082, 0.0
        %v1099 = vmax.f32 %v1083, 0.0
        %v1100 = vmax.f32 %v1084, 0.0
        %v1101 = vmax.f32 %v1085, 0.0
        %v1102 = vmax.f32 %v1086, 0.0
        %v1103 = vmax.f32 %v1087, 0.0
        %v1104 = vpack.c.bf16 %v1089, %v1088
        %v1105 = vpack.c.bf16 %v1091, %v1090
        %v1106 = vpack.c.bf16 %v1093, %v1092
        %v1107 = vpack.c.bf16 %v1095, %v1094
        %v1108 = vpack.c.bf16 %v1097, %v1096
        %v1109 = vpack.c.bf16 %v1099, %v1098
        %v1110 = vpack.c.bf16 %v1101, %v1100
        %v1111 = vpack.c.bf16 %v1103, %v1102
        %1112 = vmatprep.subr.bf16.mxu0 0
        %1113 = vmatpush1.bf16.msra.mxu0 %v1111
        %1114 = vmatprep.subr.bf16.mxu0 0
        %1115 = vmatpush1.bf16.msra.mxu0 %v1110
        %1116 = vmatprep.subr.bf16.mxu0 0
        %1117 = vmatpush1.bf16.msra.mxu0 %v1109
        %1118 = vmatprep.subr.bf16.mxu0 0
        %1119 = vmatpush1.bf16.msra.mxu0 %v1108
        %1120 = vmatprep.subr.bf16.mxu0 0
        %1121 = vmatpush1.bf16.msra.mxu0 %v1107
        %1122 = vmatprep.subr.bf16.mxu0 0
        %1123 = vmatpush1.bf16.msra.mxu0 %v1106
        %1124 = vmatprep.subr.bf16.mxu0 0
        %1125 = vmatpush1.bf16.msra.mxu0 %v1105
        %1126 = vmatprep.subr.bf16.mxu0 0
        %1127 = vmatpush1.bf16.msra.mxu0 %v1104
        %1128 = vmatprep.subr.bf16.mxu0 0
        %1129 = vmatpush2.bf16.msra.mxu0 0
        %1130 = vmatprep.subr.bf16.mxu0 0
        %1131 = vmatpush2.bf16.msra.mxu0 0
        %1132 = vmatprep.subr.bf16.mxu0 0
        %1133 = vmatpush2.bf16.msra.mxu0 0
        %1134 = vmatprep.subr.bf16.mxu0 0
        %1135 = vmatpush2.bf16.msra.mxu0 0
        %1136 = vmatprep.subr.bf16.mxu0 0
        %1137 = vmatpush2.bf16.msra.mxu0 0
        %1138 = vmatprep.subr.bf16.mxu0 0
        %1139 = vmatpush2.bf16.msra.mxu0 0
        %1140 = vmatprep.subr.bf16.mxu0 0
        %1141 = vmatpush2.bf16.msra.mxu0 0
        %1142 = vmatprep.subr.bf16.mxu0 0
        %1143 = vmatpush2.bf16.msra.mxu0 0
        %1144 = vmatprep.mubr.bf16.mxu0 0
        %1145 = vmatmul.mubr.bf16.gmra.mxu0 %v814
        %v1146 = vpop.f32.mrf.mxu0
        %v1147 = vadd.f32 0.0, %v1146
        %v1148 = vpop.f32.mrf.mxu0
        %v1149 = vpop.f32.mrf.mxu0
        %v1150 = vadd.f32 0.0, %v1149
        %v1151 = vpop.f32.mrf.mxu0
        %1152 = vmatprep.mubr.bf16.mxu0 0
        %1153 = vmatmul.mubr.bf16.gmra.mxu0 %v815
        %v1154 = vpop.f32.mrf.mxu0
        %v1155 = vadd.f32 0.0, %v1154
        %v1156 = vpop.f32.mrf.mxu0
        %v1157 = vpop.f32.mrf.mxu0
        %v1158 = vadd.f32 0.0, %v1157
        %v1159 = vpop.f32.mrf.mxu0
        %1160 = vmatprep.mubr.bf16.mxu0 0
        %1161 = vmatmul.mubr.bf16.gmra.mxu0 %v816
        %v1162 = vpop.f32.mrf.mxu0
        %v1163 = vadd.f32 0.0, %v1162
        %v1164 = vpop.f32.mrf.mxu0
        %v1165 = vpop.f32.mrf.mxu0
        %v1166 = vadd.f32 0.0, %v1165
        %v1167 = vpop.f32.mrf.mxu0
        %1168 = vmatprep.mubr.bf16.mxu0 0
        %1169 = vmatmul.mubr.bf16.gmra.mxu0 %v817
        %v1170 = vpop.f32.mrf.mxu0
        %v1171 = vadd.f32 0.0, %v1170
        %v1172 = vpop.f32.mrf.mxu0
        %v1173 = vpop.f32.mrf.mxu0
        %v1174 = vadd.f32 0.0, %v1173
        %v1175 = vpop.f32.mrf.mxu0
        %1176 = vmatprep.mubr.bf16.mxu0 0
        %1177 = vmatmul.mubr.bf16.gmra.mxu0 %v818
        %v1178 = vpop.f32.mrf.mxu0
        %v1179 = vadd.f32 0.0, %v1178
        %v1180 = vpop.f32.mrf.mxu0
        %v1181 = vpop.f32.mrf.mxu0
        %v1182 = vadd.f32 0.0, %v1181
        %v1183 = vpop.f32.mrf.mxu0
        %1184 = vmatprep.mubr.bf16.mxu0 0
        %1185 = vmatmul.mubr.bf16.gmra.mxu0 %v819
        %v1186 = vpop.f32.mrf.mxu0
        %v1187 = vadd.f32 0.0, %v1186
        %v1188 = vpop.f32.mrf.mxu0
        %v1189 = vpop.f32.mrf.mxu0
        %v1190 = vadd.f32 0.0, %v1189
        %v1191 = vpop.f32.mrf.mxu0
        %1192 = vmatprep.mubr.bf16.mxu0 0
        %1193 = vmatmul.mubr.bf16.gmra.mxu0 %v820
        %v1194 = vpop.f32.mrf.mxu0
        %v1195 = vadd.f32 0.0, %v1194
        %v1196 = vpop.f32.mrf.mxu0
        %v1197 = vpop.f32.mrf.mxu0
        %v1198 = vadd.f32 0.0, %v1197
        %v1199 = vpop.f32.mrf.mxu0
        %1200 = vmatprep.mubr.bf16.mxu0 0
        %1201 = vmatmul.mubr.bf16.gmra.mxu0 %v821
        %v1202 = vpop.f32.mrf.mxu0
        %v1203 = vadd.f32 0.0, %v1202
        %v1204 = vpop.f32.mrf.mxu0
        %v1205 = vpop.f32.mrf.mxu0
        %v1206 = vadd.f32 0.0, %v1205
        %v1207 = vpop.f32.mrf.mxu0
        %1208 = vdwg.mxu0
        %v1209 = vpack.c.bf16 %v1150, %v1147
        %v1210 = vpack.c.bf16 %v1158, %v1155
        %v1211 = vpack.c.bf16 %v1166, %v1163
        %v1212 = vpack.c.bf16 %v1174, %v1171
        %v1213 = vpack.c.bf16 %v1182, %v1179
        %v1214 = vpack.c.bf16 %v1190, %v1187
        %v1215 = vpack.c.bf16 %v1198, %v1195
        %v1216 = vpack.c.bf16 %v1206, %v1203
        %v1218 = vsel %vm636, %v1209, 0
        %v1221 = vsel %vm636, %v1210, 0
        %v1224 = vsel %vm636, %v1211, 0
        %v1227 = vsel %vm636, %v1212, 0
        %v1230 = vsel %vm636, %v1213, 0
        %v1233 = vsel %vm636, %v1214, 0
        %v1236 = vsel %vm636, %v1215, 0
        %v1239 = vsel %vm636, %v1216, 0
        %1241 = vmatprep.subr.bf16.mxu0 0
        %1242 = vmatpush1.bf16.msra.mxu0 0
        %1243 = vmatprep.subr.bf16.mxu0 0
        %1244 = vmatpush1.bf16.msra.mxu0 0
        %1245 = vmatprep.subr.bf16.mxu0 0
        %1246 = vmatpush1.bf16.msra.mxu0 0
        %1247 = vmatprep.subr.bf16.mxu0 0
        %1248 = vmatpush1.bf16.msra.mxu0 0
        %1249 = vmatprep.subr.bf16.mxu0 0
        %1250 = vmatpush1.bf16.msra.mxu0 0
        %1251 = vmatprep.subr.bf16.mxu0 0
        %1252 = vmatpush1.bf16.msra.mxu0 0
        %1253 = vmatprep.subr.bf16.mxu0 0
        %1254 = vmatpush1.bf16.msra.mxu0 %v948
        %1255 = vmatprep.subr.bf16.mxu0 0
        %1256 = vmatpush1.bf16.msra.mxu0 %v947
        %1257 = vmatprep.subr.bf16.mxu0 0
        %1258 = vmatpush2.bf16.msra.mxu0 0
        %1259 = vmatprep.subr.bf16.mxu0 0
        %1260 = vmatpush2.bf16.msra.mxu0 0
        %1261 = vmatprep.subr.bf16.mxu0 0
        %1262 = vmatpush2.bf16.msra.mxu0 0
        %1263 = vmatprep.subr.bf16.mxu0 0
        %1264 = vmatpush2.bf16.msra.mxu0 0
        %1265 = vmatprep.subr.bf16.mxu0 0
        %1266 = vmatpush2.bf16.msra.mxu0 0
        %1267 = vmatprep.subr.bf16.mxu0 0
        %1268 = vmatpush2.bf16.msra.mxu0 0
        %1269 = vmatprep.subr.bf16.mxu0 0
        %1270 = vmatpush2.bf16.msra.mxu0 0
        %1271 = vmatprep.subr.bf16.mxu0 0
        %1272 = vmatpush2.bf16.msra.mxu0 0
        %1273 = vmatprep.mubr.bf16.mxu0 0
        %1274 = vmatmul.mubr.bf16.gmra.mxu0 %v1218
        %v1275 = vpop.f32.mrf.mxu0
        %v1276 = vadd.f32 0.0, %v1275
        %v1277 = vpop.f32.mrf.mxu0
        %v1278 = vpop.f32.mrf.mxu0
        %v1279 = vadd.f32 0.0, %v1278
        %v1280 = vpop.f32.mrf.mxu0
        %1281 = vmatprep.mubr.bf16.mxu0 0
        %1282 = vmatmul.mubr.bf16.gmra.mxu0 %v1221
        %v1283 = vpop.f32.mrf.mxu0
        %v1284 = vadd.f32 0.0, %v1283
        %v1285 = vpop.f32.mrf.mxu0
        %v1286 = vpop.f32.mrf.mxu0
        %v1287 = vadd.f32 0.0, %v1286
        %v1288 = vpop.f32.mrf.mxu0
        %1289 = vmatprep.mubr.bf16.mxu0 0
        %1290 = vmatmul.mubr.bf16.gmra.mxu0 %v1224
        %v1291 = vpop.f32.mrf.mxu0
        %v1292 = vadd.f32 0.0, %v1291
        %v1293 = vpop.f32.mrf.mxu0
        %v1294 = vpop.f32.mrf.mxu0
        %v1295 = vadd.f32 0.0, %v1294
        %v1296 = vpop.f32.mrf.mxu0
        %1297 = vmatprep.mubr.bf16.mxu0 0
        %1298 = vmatmul.mubr.bf16.gmra.mxu0 %v1227
        %v1299 = vpop.f32.mrf.mxu0
        %v1300 = vadd.f32 0.0, %v1299
        %v1301 = vpop.f32.mrf.mxu0
        %v1302 = vpop.f32.mrf.mxu0
        %v1303 = vadd.f32 0.0, %v1302
        %v1304 = vpop.f32.mrf.mxu0
        %1305 = vmatprep.mubr.bf16.mxu0 0
        %1306 = vmatmul.mubr.bf16.gmra.mxu0 %v1230
        %v1307 = vpop.f32.mrf.mxu0
        %v1308 = vadd.f32 0.0, %v1307
        %v1309 = vpop.f32.mrf.mxu0
        %v1310 = vpop.f32.mrf.mxu0
        %v1311 = vadd.f32 0.0, %v1310
        %v1312 = vpop.f32.mrf.mxu0
        %1313 = vmatprep.mubr.bf16.mxu0 0
        %1314 = vmatmul.mubr.bf16.gmra.mxu0 %v1233
        %v1315 = vpop.f32.mrf.mxu0
        %v1316 = vadd.f32 0.0, %v1315
        %v1317 = vpop.f32.mrf.mxu0
        %v1318 = vpop.f32.mrf.mxu0
        %v1319 = vadd.f32 0.0, %v1318
        %v1320 = vpop.f32.mrf.mxu0
        %1321 = vmatprep.mubr.bf16.mxu0 0
        %1322 = vmatmul.mubr.bf16.gmra.mxu0 %v1236
        %v1323 = vpop.f32.mrf.mxu0
        %v1324 = vadd.f32 0.0, %v1323
        %v1325 = vpop.f32.mrf.mxu0
        %v1326 = vpop.f32.mrf.mxu0
        %v1327 = vadd.f32 0.0, %v1326
        %v1328 = vpop.f32.mrf.mxu0
        %1329 = vmatprep.mubr.bf16.mxu0 0
        %1330 = vmatmul.mubr.bf16.gmra.mxu0 %v1239
        %v1331 = vpop.f32.mrf.mxu0
        %v1332 = vadd.f32 0.0, %v1331
        %v1333 = vpop.f32.mrf.mxu0
        %v1334 = vpop.f32.mrf.mxu0
        %v1335 = vadd.f32 0.0, %v1334
        %v1336 = vpop.f32.mrf.mxu0
        %1337 = vdwg.mxu0
        %v1338 = vadd.f32 %v758, %v1276
        %v1339 = vadd.f32 %v759, %v1279
        %v1340 = vadd.f32 %v760, %v1284
        %v1341 = vadd.f32 %v761, %v1287
        %v1342 = vadd.f32 %v762, %v1292
        %v1343 = vadd.f32 %v763, %v1295
        %v1344 = vadd.f32 %v764, %v1300
        %v1345 = vadd.f32 %v765, %v1303
        %v1346 = vadd.f32 %v766, %v1308
        %v1347 = vadd.f32 %v767, %v1311
        %v1348 = vadd.f32 %v768, %v1316
        %v1349 = vadd.f32 %v769, %v1319
        %v1350 = vadd.f32 %v770, %v1324
        %v1351 = vadd.f32 %v771, %v1327
        %v1352 = vadd.f32 %v772, %v1332
        %v1353 = vadd.f32 %v773, %v1335
        %v1354 = vmax.f32 %v1338, 0.0
        %v1355 = vmax.f32 %v1339, 0.0
        %v1356 = vmax.f32 %v1340, 0.0
        %v1357 = vmax.f32 %v1341, 0.0
        %v1358 = vmax.f32 %v1342, 0.0
        %v1359 = vmax.f32 %v1343, 0.0
        %v1360 = vmax.f32 %v1344, 0.0
        %v1361 = vmax.f32 %v1345, 0.0
        %v1362 = vmax.f32 %v1346, 0.0
        %v1363 = vmax.f32 %v1347, 0.0
        %v1364 = vmax.f32 %v1348, 0.0
        %v1365 = vmax.f32 %v1349, 0.0
        %v1366 = vmax.f32 %v1350, 0.0
        %v1367 = vmax.f32 %v1351, 0.0
        %v1368 = vmax.f32 %v1352, 0.0
        %v1369 = vmax.f32 %v1353, 0.0
        %v1370 = vpack.c.bf16 %v1355, %v1354
        %v1371 = vpack.c.bf16 %v1357, %v1356
        %v1372 = vpack.c.bf16 %v1359, %v1358
        %v1373 = vpack.c.bf16 %v1361, %v1360
        %v1374 = vpack.c.bf16 %v1363, %v1362
        %v1375 = vpack.c.bf16 %v1365, %v1364
        %v1376 = vpack.c.bf16 %v1367, %v1366
        %v1377 = vpack.c.bf16 %v1369, %v1368
        %1378 = vmatprep.subr.bf16.mxu0 0
        %1379 = vmatpush1.bf16.msra.mxu0 %v1377
        %1380 = vmatprep.subr.bf16.mxu0 0
        %1381 = vmatpush1.bf16.msra.mxu0 %v1376
        %1382 = vmatprep.subr.bf16.mxu0 0
        %1383 = vmatpush1.bf16.msra.mxu0 %v1375
        %1384 = vmatprep.subr.bf16.mxu0 0
        %1385 = vmatpush1.bf16.msra.mxu0 %v1374
        %1386 = vmatprep.subr.bf16.mxu0 0
        %1387 = vmatpush1.bf16.msra.mxu0 %v1373
        %1388 = vmatprep.subr.bf16.mxu0 0
        %1389 = vmatpush1.bf16.msra.mxu0 %v1372
        %1390 = vmatprep.subr.bf16.mxu0 0
        %1391 = vmatpush1.bf16.msra.mxu0 %v1371
        %1392 = vmatprep.subr.bf16.mxu0 0
        %1393 = vmatpush1.bf16.msra.mxu0 %v1370
        %1394 = vmatprep.subr.bf16.mxu0 0
        %1395 = vmatpush2.bf16.msra.mxu0 0
        %1396 = vmatprep.subr.bf16.mxu0 0
        %1397 = vmatpush2.bf16.msra.mxu0 0
        %1398 = vmatprep.subr.bf16.mxu0 0
        %1399 = vmatpush2.bf16.msra.mxu0 0
        %1400 = vmatprep.subr.bf16.mxu0 0
        %1401 = vmatpush2.bf16.msra.mxu0 0
        %1402 = vmatprep.subr.bf16.mxu0 0
        %1403 = vmatpush2.bf16.msra.mxu0 0
        %1404 = vmatprep.subr.bf16.mxu0 0
        %1405 = vmatpush2.bf16.msra.mxu0 0
        %1406 = vmatprep.subr.bf16.mxu0 0
        %1407 = vmatpush2.bf16.msra.mxu0 0
        %1408 = vmatprep.subr.bf16.mxu0 0
        %1409 = vmatpush2.bf16.msra.mxu0 0
        %1410 = vmatprep.mubr.bf16.mxu0 0
        %1411 = vmatmul.mubr.bf16.gmra.mxu0 %v814
        %v1412 = vpop.f32.mrf.mxu0
        %v1413 = vadd.f32 0.0, %v1412
        %v1414 = vpop.f32.mrf.mxu0
        %v1415 = vpop.f32.mrf.mxu0
        %v1416 = vadd.f32 0.0, %v1415
        %v1417 = vpop.f32.mrf.mxu0
        %1418 = vmatprep.mubr.bf16.mxu0 0
        %1419 = vmatmul.mubr.bf16.gmra.mxu0 %v815
        %v1420 = vpop.f32.mrf.mxu0
        %v1421 = vadd.f32 0.0, %v1420
        %v1422 = vpop.f32.mrf.mxu0
        %v1423 = vpop.f32.mrf.mxu0
        %v1424 = vadd.f32 0.0, %v1423
        %v1425 = vpop.f32.mrf.mxu0
        %1426 = vmatprep.mubr.bf16.mxu0 0
        %1427 = vmatmul.mubr.bf16.gmra.mxu0 %v816
        %v1428 = vpop.f32.mrf.mxu0
        %v1429 = vadd.f32 0.0, %v1428
        %v1430 = vpop.f32.mrf.mxu0
        %v1431 = vpop.f32.mrf.mxu0
        %v1432 = vadd.f32 0.0, %v1431
        %v1433 = vpop.f32.mrf.mxu0
        %1434 = vmatprep.mubr.bf16.mxu0 0
        %1435 = vmatmul.mubr.bf16.gmra.mxu0 %v817
        %v1436 = vpop.f32.mrf.mxu0
        %v1437 = vadd.f32 0.0, %v1436
        %v1438 = vpop.f32.mrf.mxu0
        %v1439 = vpop.f32.mrf.mxu0
        %v1440 = vadd.f32 0.0, %v1439
        %v1441 = vpop.f32.mrf.mxu0
        %1442 = vmatprep.mubr.bf16.mxu0 0
        %1443 = vmatmul.mubr.bf16.gmra.mxu0 %v818
        %v1444 = vpop.f32.mrf.mxu0
        %v1445 = vadd.f32 0.0, %v1444
        %v1446 = vpop.f32.mrf.mxu0
        %v1447 = vpop.f32.mrf.mxu0
        %v1448 = vadd.f32 0.0, %v1447
        %v1449 = vpop.f32.mrf.mxu0
        %1450 = vmatprep.mubr.bf16.mxu0 0
        %1451 = vmatmul.mubr.bf16.gmra.mxu0 %v819
        %v1452 = vpop.f32.mrf.mxu0
        %v1453 = vadd.f32 0.0, %v1452
        %v1454 = vpop.f32.mrf.mxu0
        %v1455 = vpop.f32.mrf.mxu0
        %v1456 = vadd.f32 0.0, %v1455
        %v1457 = vpop.f32.mrf.mxu0
        %1458 = vmatprep.mubr.bf16.mxu0 0
        %1459 = vmatmul.mubr.bf16.gmra.mxu0 %v820
        %v1460 = vpop.f32.mrf.mxu0
        %v1461 = vadd.f32 0.0, %v1460
        %v1462 = vpop.f32.mrf.mxu0
        %v1463 = vpop.f32.mrf.mxu0
        %v1464 = vadd.f32 0.0, %v1463
        %v1465 = vpop.f32.mrf.mxu0
        %1466 = vmatprep.mubr.bf16.mxu0 0
        %1467 = vmatmul.mubr.bf16.gmra.mxu0 %v821
        %v1468 = vpop.f32.mrf.mxu0
        %v1469 = vadd.f32 0.0, %v1468
        %v1470 = vpop.f32.mrf.mxu0
        %v1471 = vpop.f32.mrf.mxu0
        %v1472 = vadd.f32 0.0, %v1471
        %v1473 = vpop.f32.mrf.mxu0
        %1474 = vdwg.mxu0
        %v1475 = vld [vmem:[%s5] sm:$0xf]
        %v1476 = vld [vmem:[%s5 + $0x4] sm:$0xf]
        %v1477 = vld [vmem:[%s5 + $0x8] sm:$0xf]
        %v1478 = vld [vmem:[%s5 + $0xc] sm:$0xf]
        %v1479 = vpack.c.bf16 %v1416, %v1413
        %v1480 = vpack.c.bf16 %v1424, %v1421
        %v1481 = vpack.c.bf16 %v1432, %v1429
        %v1482 = vpack.c.bf16 %v1440, %v1437
        %v1483 = vpack.c.bf16 %v1448, %v1445
        %v1484 = vpack.c.bf16 %v1456, %v1453
        %v1485 = vpack.c.bf16 %v1464, %v1461
        %v1486 = vpack.c.bf16 %v1472, %v1469
        %v1487 = vld [vmem:[#allocation5] sm:$0xf]
        %v1488 = vld [vmem:[#allocation5 + $0x4] sm:$0xf]
        %v1489 = vld [vmem:[#allocation5 + $0x8] sm:$0xf]
        %v1490 = vld [vmem:[#allocation5 + $0xc] sm:$0xf]
        %v1495 = vunpack.c.l.b16 %v1487
        %v1496 = vunpack.c.l.b16 %v1488
        %v1497 = vunpack.c.l.b16 %v1489
        %v1498 = vunpack.c.l.b16 %v1490
        %v1499 = vpack.c.b16 %v1496, %v1495
        %v1500 = vpack.c.b16 %v1498, %v1497
        %v1504 = vsel %vm636, %v1479, 0
        %v1507 = vsel %vm636, %v1480, 0
        %v1510 = vsel %vm636, %v1481, 0
        %v1513 = vsel %vm636, %v1482, 0
        %v1516 = vsel %vm636, %v1483, 0
        %v1519 = vsel %vm636, %v1484, 0
        %v1522 = vsel %vm636, %v1485, 0
        %v1525 = vsel %vm636, %v1486, 0
        %1527 = vmatprep.subr.bf16.mxu0 0
        %1528 = vmatpush1.bf16.msra.mxu0 0
        %1529 = vmatprep.subr.bf16.mxu0 0
        %1530 = vmatpush1.bf16.msra.mxu0 0
        %1531 = vmatprep.subr.bf16.mxu0 0
        %1532 = vmatpush1.bf16.msra.mxu0 0
        %1533 = vmatprep.subr.bf16.mxu0 0
        %1534 = vmatpush1.bf16.msra.mxu0 0
        %1535 = vmatprep.subr.bf16.mxu0 0
        %1536 = vmatpush1.bf16.msra.mxu0 0
        %1537 = vmatprep.subr.bf16.mxu0 0
        %1538 = vmatpush1.bf16.msra.mxu0 0
        %1539 = vmatprep.subr.bf16.mxu0 0
        %1540 = vmatpush1.bf16.msra.mxu0 %v1500
        %1541 = vmatprep.subr.bf16.mxu0 0
        %1542 = vmatpush1.bf16.msra.mxu0 %v1499
        %1543 = vmatprep.subr.bf16.mxu0 0
        %1544 = vmatpush2.bf16.msra.mxu0 0
        %1545 = vmatprep.subr.bf16.mxu0 0
        %1546 = vmatpush2.bf16.msra.mxu0 0
        %1547 = vmatprep.subr.bf16.mxu0 0
        %1548 = vmatpush2.bf16.msra.mxu0 0
        %1549 = vmatprep.subr.bf16.mxu0 0
        %1550 = vmatpush2.bf16.msra.mxu0 0
        %1551 = vmatprep.subr.bf16.mxu0 0
        %1552 = vmatpush2.bf16.msra.mxu0 0
        %1553 = vmatprep.subr.bf16.mxu0 0
        %1554 = vmatpush2.bf16.msra.mxu0 0
        %1555 = vmatprep.subr.bf16.mxu0 0
        %1556 = vmatpush2.bf16.msra.mxu0 0
        %1557 = vmatprep.subr.bf16.mxu0 0
        %1558 = vmatpush2.bf16.msra.mxu0 0
        %1559 = vmatprep.mubr.bf16.mxu0 0
        %1560 = vmatmul.mubr.bf16.gmra.mxu0 %v1504
        %v1561 = vpop.f32.mrf.mxu0
        %v1562 = vadd.f32 0.0, %v1561
        %v1563 = vpop.f32.mrf.mxu0
        %v1564 = vpop.f32.mrf.mxu0
        %v1565 = vadd.f32 0.0, %v1564
        %v1566 = vpop.f32.mrf.mxu0
        %1567 = vmatprep.mubr.bf16.mxu0 0
        %1568 = vmatmul.mubr.bf16.gmra.mxu0 %v1507
        %v1569 = vpop.f32.mrf.mxu0
        %v1570 = vadd.f32 0.0, %v1569
        %v1571 = vpop.f32.mrf.mxu0
        %v1572 = vpop.f32.mrf.mxu0
        %v1573 = vadd.f32 0.0, %v1572
        %v1574 = vpop.f32.mrf.mxu0
        %1575 = vmatprep.mubr.bf16.mxu0 0
        %1576 = vmatmul.mubr.bf16.gmra.mxu0 %v1510
        %v1577 = vpop.f32.mrf.mxu0
        %v1578 = vadd.f32 0.0, %v1577
        %v1579 = vpop.f32.mrf.mxu0
        %v1580 = vpop.f32.mrf.mxu0
        %v1581 = vadd.f32 0.0, %v1580
        %v1582 = vpop.f32.mrf.mxu0
        %1583 = vmatprep.mubr.bf16.mxu0 0
        %1584 = vmatmul.mubr.bf16.gmra.mxu0 %v1513
        %v1585 = vpop.f32.mrf.mxu0
        %v1586 = vadd.f32 0.0, %v1585
        %v1587 = vpop.f32.mrf.mxu0
        %v1588 = vpop.f32.mrf.mxu0
        %v1589 = vadd.f32 0.0, %v1588
        %v1590 = vpop.f32.mrf.mxu0
        %1591 = vmatprep.mubr.bf16.mxu0 0
        %1592 = vmatmul.mubr.bf16.gmra.mxu0 %v1516
        %v1593 = vpop.f32.mrf.mxu0
        %v1594 = vadd.f32 0.0, %v1593
        %v1595 = vpop.f32.mrf.mxu0
        %v1596 = vpop.f32.mrf.mxu0
        %v1597 = vadd.f32 0.0, %v1596
        %v1598 = vpop.f32.mrf.mxu0
        %1599 = vmatprep.mubr.bf16.mxu0 0
        %1600 = vmatmul.mubr.bf16.gmra.mxu0 %v1519
        %v1601 = vpop.f32.mrf.mxu0
        %v1602 = vadd.f32 0.0, %v1601
        %v1603 = vpop.f32.mrf.mxu0
        %v1604 = vpop.f32.mrf.mxu0
        %v1605 = vadd.f32 0.0, %v1604
        %v1606 = vpop.f32.mrf.mxu0
        %1607 = vmatprep.mubr.bf16.mxu0 0
        %1608 = vmatmul.mubr.bf16.gmra.mxu0 %v1522
        %v1609 = vpop.f32.mrf.mxu0
        %v1610 = vadd.f32 0.0, %v1609
        %v1611 = vpop.f32.mrf.mxu0
        %v1612 = vpop.f32.mrf.mxu0
        %v1613 = vadd.f32 0.0, %v1612
        %v1614 = vpop.f32.mrf.mxu0
        %1615 = vmatprep.mubr.bf16.mxu0 0
        %1616 = vmatmul.mubr.bf16.gmra.mxu0 %v1525
        %v1617 = vpop.f32.mrf.mxu0
        %v1618 = vadd.f32 0.0, %v1617
        %v1619 = vpop.f32.mrf.mxu0
        %v1620 = vpop.f32.mrf.mxu0
        %v1621 = vadd.f32 0.0, %v1620
        %v1622 = vpop.f32.mrf.mxu0
        %1623 = vdwg.mxu0
        %v1628 = vunpack.c.l.b16 %v1475
        %v1629 = vunpack.c.l.b16 %v1476
        %v1630 = vunpack.c.l.b16 %v1477
        %v1631 = vunpack.c.l.b16 %v1478
        %v1632 = vpack.c.b16 %v1629, %v1628
        %v1633 = vpack.c.b16 %v1631, %v1630
        %1636 = vmatprep.subr.bf16.mxu0 0
        %1637 = vmatpush1.bf16.msra.mxu0 0
        %1638 = vmatprep.subr.bf16.mxu0 0
        %1639 = vmatpush1.bf16.msra.mxu0 0
        %1640 = vmatprep.subr.bf16.mxu0 0
        %1641 = vmatpush1.bf16.msra.mxu0 0
        %1642 = vmatprep.subr.bf16.mxu0 0
        %1643 = vmatpush1.bf16.msra.mxu0 0
        %1644 = vmatprep.subr.bf16.mxu0 0
        %1645 = vmatpush1.bf16.msra.mxu0 0
        %1646 = vmatprep.subr.bf16.mxu0 0
        %1647 = vmatpush1.bf16.msra.mxu0 0
        %1648 = vmatprep.subr.bf16.mxu0 0
        %1649 = vmatpush1.bf16.msra.mxu0 %v1633
        %1650 = vmatprep.subr.bf16.mxu0 0
        %1651 = vmatpush1.bf16.msra.mxu0 %v1632
        %1652 = vmatprep.subr.bf16.mxu0 0
        %1653 = vmatpush2.bf16.msra.mxu0 0
        %1654 = vmatprep.subr.bf16.mxu0 0
        %1655 = vmatpush2.bf16.msra.mxu0 0
        %1656 = vmatprep.subr.bf16.mxu0 0
        %1657 = vmatpush2.bf16.msra.mxu0 0
        %1658 = vmatprep.subr.bf16.mxu0 0
        %1659 = vmatpush2.bf16.msra.mxu0 0
        %1660 = vmatprep.subr.bf16.mxu0 0
        %1661 = vmatpush2.bf16.msra.mxu0 0
        %1662 = vmatprep.subr.bf16.mxu0 0
        %1663 = vmatpush2.bf16.msra.mxu0 0
        %1664 = vmatprep.subr.bf16.mxu0 0
        %1665 = vmatpush2.bf16.msra.mxu0 0
        %1666 = vmatprep.subr.bf16.mxu0 0
        %1667 = vmatpush2.bf16.msra.mxu0 0
        %1668 = vmatprep.mubr.bf16.mxu0 0
        %1669 = vmatmul.mubr.bf16.gmra.mxu0 %v638
        %v1670 = vpop.f32.mrf.mxu0
        %v1671 = vadd.f32 %v1562, %v1670
        %v1672 = vpop.f32.mrf.mxu0
        %v1673 = vpop.f32.mrf.mxu0
        %v1674 = vadd.f32 %v1565, %v1673
        %v1675 = vpop.f32.mrf.mxu0
        %1676 = vmatprep.mubr.bf16.mxu0 0
        %1677 = vmatmul.mubr.bf16.gmra.mxu0 %v641
        %v1678 = vpop.f32.mrf.mxu0
        %v1679 = vadd.f32 %v1570, %v1678
        %v1680 = vpop.f32.mrf.mxu0
        %v1681 = vpop.f32.mrf.mxu0
        %v1682 = vadd.f32 %v1573, %v1681
        %v1683 = vpop.f32.mrf.mxu0
        %1684 = vmatprep.mubr.bf16.mxu0 0
        %1685 = vmatmul.mubr.bf16.gmra.mxu0 %v644
        %v1686 = vpop.f32.mrf.mxu0
        %v1687 = vadd.f32 %v1578, %v1686
        %v1688 = vpop.f32.mrf.mxu0
        %v1689 = vpop.f32.mrf.mxu0
        %v1690 = vadd.f32 %v1581, %v1689
        %v1691 = vpop.f32.mrf.mxu0
        %1692 = vmatprep.mubr.bf16.mxu0 0
        %1693 = vmatmul.mubr.bf16.gmra.mxu0 %v647
        %v1694 = vpop.f32.mrf.mxu0
        %v1695 = vadd.f32 %v1586, %v1694
        %v1696 = vpop.f32.mrf.mxu0
        %v1697 = vpop.f32.mrf.mxu0
        %v1698 = vadd.f32 %v1589, %v1697
        %v1699 = vpop.f32.mrf.mxu0
        %1700 = vmatprep.mubr.bf16.mxu0 0
        %1701 = vmatmul.mubr.bf16.gmra.mxu0 %v650
        %v1702 = vpop.f32.mrf.mxu0
        %v1703 = vadd.f32 %v1594, %v1702
        %v1704 = vpop.f32.mrf.mxu0
        %v1705 = vpop.f32.mrf.mxu0
        %v1706 = vadd.f32 %v1597, %v1705
        %v1707 = vpop.f32.mrf.mxu0
        %1708 = vmatprep.mubr.bf16.mxu0 0
        %1709 = vmatmul.mubr.bf16.gmra.mxu0 %v653
        %v1710 = vpop.f32.mrf.mxu0
        %v1711 = vadd.f32 %v1602, %v1710
        %v1712 = vpop.f32.mrf.mxu0
        %v1713 = vpop.f32.mrf.mxu0
        %v1714 = vadd.f32 %v1605, %v1713
        %v1715 = vpop.f32.mrf.mxu0
        %1716 = vmatprep.mubr.bf16.mxu0 0
        %1717 = vmatmul.mubr.bf16.gmra.mxu0 %v656
        %v1718 = vpop.f32.mrf.mxu0
        %v1719 = vadd.f32 %v1610, %v1718
        %v1720 = vpop.f32.mrf.mxu0
        %v1721 = vpop.f32.mrf.mxu0
        %v1722 = vadd.f32 %v1613, %v1721
        %v1723 = vpop.f32.mrf.mxu0
        %1724 = vmatprep.mubr.bf16.mxu0 0
        %1725 = vmatmul.mubr.bf16.gmra.mxu0 %v659
        %v1726 = vpop.f32.mrf.mxu0
        %v1727 = vadd.f32 %v1618, %v1726
        %v1728 = vpop.f32.mrf.mxu0
        %v1729 = vpop.f32.mrf.mxu0
        %v1730 = vadd.f32 %v1621, %v1729
        %v1731 = vpop.f32.mrf.mxu0
        %1732 = vdwg.mxu0
        %v1733 = vmax.f32 %v1671, 0.0
        %v1734 = vmax.f32 %v1674, 0.0
        %v1735 = vmax.f32 %v1679, 0.0
        %v1736 = vmax.f32 %v1682, 0.0
        %v1737 = vmax.f32 %v1687, 0.0
        %v1738 = vmax.f32 %v1690, 0.0
        %v1739 = vmax.f32 %v1695, 0.0
        %v1740 = vmax.f32 %v1698, 0.0
        %v1741 = vmax.f32 %v1703, 0.0
        %v1742 = vmax.f32 %v1706, 0.0
        %v1743 = vmax.f32 %v1711, 0.0
        %v1744 = vmax.f32 %v1714, 0.0
        %v1745 = vmax.f32 %v1719, 0.0
        %v1746 = vmax.f32 %v1722, 0.0
        %v1747 = vmax.f32 %v1727, 0.0
        %v1748 = vmax.f32 %v1730, 0.0
        %v1749 = vpack.c.bf16 %v1734, %v1733
        %v1750 = vpack.c.bf16 %v1736, %v1735
        %v1751 = vpack.c.bf16 %v1738, %v1737
        %v1752 = vpack.c.bf16 %v1740, %v1739
        %v1753 = vpack.c.bf16 %v1742, %v1741
        %v1754 = vpack.c.bf16 %v1744, %v1743
        %v1755 = vpack.c.bf16 %v1746, %v1745
        %v1756 = vpack.c.bf16 %v1748, %v1747
        %1757 = vmatprep.subr.bf16.mxu0 0
        %1758 = vmatpush1.bf16.msra.mxu0 %v1756
        %1759 = vmatprep.subr.bf16.mxu0 0
        %1760 = vmatpush1.bf16.msra.mxu0 %v1755
        %1761 = vmatprep.subr.bf16.mxu0 0
        %1762 = vmatpush1.bf16.msra.mxu0 %v1754
        %1763 = vmatprep.subr.bf16.mxu0 0
        %1764 = vmatpush1.bf16.msra.mxu0 %v1753
        %1765 = vmatprep.subr.bf16.mxu0 0
        %1766 = vmatpush1.bf16.msra.mxu0 %v1752
        %1767 = vmatprep.subr.bf16.mxu0 0
        %1768 = vmatpush1.bf16.msra.mxu0 %v1751
        %1769 = vmatprep.subr.bf16.mxu0 0
        %1770 = vmatpush1.bf16.msra.mxu0 %v1750
        %1771 = vmatprep.subr.bf16.mxu0 0
        %1772 = vmatpush1.bf16.msra.mxu0 %v1749
        %1773 = vmatprep.subr.bf16.mxu0 0
        %1774 = vmatpush2.bf16.msra.mxu0 0
        %1775 = vmatprep.subr.bf16.mxu0 0
        %1776 = vmatpush2.bf16.msra.mxu0 0
        %1777 = vmatprep.subr.bf16.mxu0 0
        %1778 = vmatpush2.bf16.msra.mxu0 0
        %1779 = vmatprep.subr.bf16.mxu0 0
        %1780 = vmatpush2.bf16.msra.mxu0 0
        %1781 = vmatprep.subr.bf16.mxu0 0
        %1782 = vmatpush2.bf16.msra.mxu0 0
        %1783 = vmatprep.subr.bf16.mxu0 0
        %1784 = vmatpush2.bf16.msra.mxu0 0
        %1785 = vmatprep.subr.bf16.mxu0 0
        %1786 = vmatpush2.bf16.msra.mxu0 0
        %1787 = vmatprep.subr.bf16.mxu0 0
        %1788 = vmatpush2.bf16.msra.mxu0 0
        %1789 = vmatprep.mubr.bf16.mxu0 0
        %1790 = vmatmul.mubr.bf16.gmra.mxu0 %v579
        %v1791 = vpop.f32.mrf.mxu0
        %v1792 = vadd.f32 0.0, %v1791
        %v1793 = vpop.f32.mrf.mxu0
        %v1794 = vpop.f32.mrf.mxu0
        %v1795 = vpop.f32.mrf.mxu0
        %1796 = vdwg.mxu0
        %1797 = vst.msk [vmem:[%s515] sm:$0xff] %vm636, %v1792
        %v1798 = vpack.c.bf16 %v1792, %v1792
        %v1799 = vld [vmem:[#allocation7] sm:$0xf]
        %v1800 = vld [vmem:[#allocation7 + $0x4] sm:$0xf]
        %v1801 = vld [vmem:[#allocation7 + $0x8] sm:$0xf]
        %v1802 = vld [vmem:[#allocation7 + $0xc] sm:$0xf]
        %v1803 = vld [vmem:[%s8] sm:$0x1]
        %v1805 = vlaneseq
        %v1806 = vshrl.u32 %v1805, 7
        %v1807 = vsub.s32 0, %v1806
        %v1808 = vrot.slane %v1803, %v1807
        %v1814 = vunpack.c.l.b16 %v1799
        %v1815 = vunpack.c.l.b16 %v1800
        %v1816 = vunpack.c.l.b16 %v1801
        %v1817 = vunpack.c.l.b16 %v1802
        %v1818 = vpack.c.b16 %v1815, %v1814
        %v1819 = vpack.c.b16 %v1817, %v1816
        %v1823 = vsel %vm636, %v1798, 0
        %1825 = vmatprep.subr.bf16.mxu0 0
        %1826 = vmatpush1.bf16.msra.mxu0 0
        %1827 = vmatprep.subr.bf16.mxu0 0
        %1828 = vmatpush1.bf16.msra.mxu0 0
        %1829 = vmatprep.subr.bf16.mxu0 0
        %1830 = vmatpush1.bf16.msra.mxu0 0
        %1831 = vmatprep.subr.bf16.mxu0 0
        %1832 = vmatpush1.bf16.msra.mxu0 0
        %1833 = vmatprep.subr.bf16.mxu0 0
        %1834 = vmatpush1.bf16.msra.mxu0 0
        %1835 = vmatprep.subr.bf16.mxu0 0
        %1836 = vmatpush1.bf16.msra.mxu0 0
        %1837 = vmatprep.subr.bf16.mxu0 0
        %1838 = vmatpush1.bf16.msra.mxu0 %v1819
        %1839 = vmatprep.subr.bf16.mxu0 0
        %1840 = vmatpush1.bf16.msra.mxu0 %v1818
        %1841 = vmatprep.subr.bf16.mxu0 0
        %1842 = vmatpush2.bf16.msra.mxu0 0
        %1843 = vmatprep.subr.bf16.mxu0 0
        %1844 = vmatpush2.bf16.msra.mxu0 0
        %1845 = vmatprep.subr.bf16.mxu0 0
        %1846 = vmatpush2.bf16.msra.mxu0 0
        %1847 = vmatprep.subr.bf16.mxu0 0
        %1848 = vmatpush2.bf16.msra.mxu0 0
        %1849 = vmatprep.subr.bf16.mxu0 0
        %1850 = vmatpush2.bf16.msra.mxu0 0
        %1851 = vmatprep.subr.bf16.mxu0 0
        %1852 = vmatpush2.bf16.msra.mxu0 0
        %1853 = vmatprep.subr.bf16.mxu0 0
        %1854 = vmatpush2.bf16.msra.mxu0 0
        %1855 = vmatprep.subr.bf16.mxu0 0
        %1856 = vmatpush2.bf16.msra.mxu0 0
        %1857 = vmatprep.mubr.bf16.mxu0 0
        %1858 = vmatmul.mubr.bf16.gmra.mxu0 %v1823
        %v1859 = vpop.f32.mrf.mxu0
        %v1860 = vadd.f32 %v1808, %v1859
        %v1861 = vpop.f32.mrf.mxu0
        %v1862 = vpop.f32.mrf.mxu0
        %v1863 = vpop.f32.mrf.mxu0
        %1864 = vdwg.mxu0
        %v1865 = vmax.f32 %v1860, 0.0
        %v1866 = vpack.c.bf16 %v1865, %v1865
        %v1867 = vld [vmem:[%s9] sm:$0xf]
        %v1868 = vld [vmem:[%s9 + $0x4] sm:$0xf]
        %v1869 = vld [vmem:[%s9 + $0x8] sm:$0xf]
        %v1870 = vld [vmem:[%s9 + $0xc] sm:$0xf]
        %v1871 = vld [vmem:[%s10] sm:$0x1]
        %v1873 = vlaneseq
        %v1874 = vshrl.u32 %v1873, 7
        %v1875 = vsub.s32 0, %v1874
        %v1876 = vrot.slane %v1871, %v1875
        %v1882 = vunpack.c.l.b16 %v1867
        %v1883 = vunpack.c.l.b16 %v1868
        %v1884 = vunpack.c.l.b16 %v1869
        %v1885 = vunpack.c.l.b16 %v1870
        %v1886 = vpack.c.b16 %v1883, %v1882
        %v1887 = vpack.c.b16 %v1885, %v1884
        %v1891 = vsel %vm636, %v1866, 0
        %1893 = vmatprep.subr.bf16.mxu0 0
        %1894 = vmatpush1.bf16.msra.mxu0 0
        %1895 = vmatprep.subr.bf16.mxu0 0
        %1896 = vmatpush1.bf16.msra.mxu0 0
        %1897 = vmatprep.subr.bf16.mxu0 0
        %1898 = vmatpush1.bf16.msra.mxu0 0
        %1899 = vmatprep.subr.bf16.mxu0 0
        %1900 = vmatpush1.bf16.msra.mxu0 0
        %1901 = vmatprep.subr.bf16.mxu0 0
        %1902 = vmatpush1.bf16.msra.mxu0 0
        %1903 = vmatprep.subr.bf16.mxu0 0
        %1904 = vmatpush1.bf16.msra.mxu0 0
        %1905 = vmatprep.subr.bf16.mxu0 0
        %1906 = vmatpush1.bf16.msra.mxu0 %v1887
        %1907 = vmatprep.subr.bf16.mxu0 0
        %1908 = vmatpush1.bf16.msra.mxu0 %v1886
        %1909 = vmatprep.subr.bf16.mxu0 0
        %1910 = vmatpush2.bf16.msra.mxu0 0
        %1911 = vmatprep.subr.bf16.mxu0 0
        %1912 = vmatpush2.bf16.msra.mxu0 0
        %1913 = vmatprep.subr.bf16.mxu0 0
        %1914 = vmatpush2.bf16.msra.mxu0 0
        %1915 = vmatprep.subr.bf16.mxu0 0
        %1916 = vmatpush2.bf16.msra.mxu0 0
        %1917 = vmatprep.subr.bf16.mxu0 0
        %1918 = vmatpush2.bf16.msra.mxu0 0
        %1919 = vmatprep.subr.bf16.mxu0 0
        %1920 = vmatpush2.bf16.msra.mxu0 0
        %1921 = vmatprep.subr.bf16.mxu0 0
        %1922 = vmatpush2.bf16.msra.mxu0 0
        %1923 = vmatprep.subr.bf16.mxu0 0
        %1924 = vmatpush2.bf16.msra.mxu0 0
        %1925 = vmatprep.mubr.bf16.mxu0 0
        %1926 = vmatmul.mubr.bf16.gmra.mxu0 %v1891
        %v1927 = vpop.f32.mrf.mxu0
        %v1928 = vadd.f32 %v1876, %v1927
        %v1929 = vpop.f32.mrf.mxu0
        %v1930 = vpop.f32.mrf.mxu0
        %v1931 = vpop.f32.mrf.mxu0
        %1932 = vdwg.mxu0
        %vm1933 = vcmask 31744
        %1934 = vst.msk [vmem:[%s541] sm:$0xff] %vm1933, %v1928
        %v1935 = vxor.u32 %v1928, 2147483648
        %v1936 = vmul.f32 %v1935, 1.442695
        %v1937 = vpow.pop %v1936
        %v1938 = vadd.f32 %v1937, 1.0
        %v1939 = vrcp.pop %v1938
        %v1940 = vmul.f32 1.0, %v1939
        %1941 = vst.msk [vmem:[%s545] sm:$0xff] %vm1933, %v1940
        %s1942 = sand.u32 %s286, 1
        %s1943 = scalar_lea.sflag [#allocation4], %s1942
        %s1944 = sand.u32 %s286, 1
        %s1945 = smul.addr %s1944, 8
        %s1946 = scalar_lea.vmem [#allocation8], %s1945
        %p1947 = scmp.lt.s32.totalorder %s32, 1
        %s1948 = scalar_select %p1947, %s32, 1
        %s1949 = smul.addr %s1948, 8
        %s1950 = scalar_lea.vmem %s12, %s1949
        %p1951 = scmp.lt.s32.totalorder %s32, 1
        %s1952 = scalar_select %p1951, %s32, 1
        %s1953 = smul.addr %s1952, 8
        %s1954 = scalar_lea.vmem %s13, %s1953
        // Predicated region
        $region77: #{tpu_custom_call.1} parent=63 // pred_check
          %p1955 = pneg %p296
        $region78: #{tpu_custom_call.1} parent=63 // pred_check_branch
          %1957 = sbr.rel (%p1955) target = $region80
        $region79: #{tpu_custom_call.1} parent=63 // pred_region
          %s1959 = ssub.s32 128, 128
          %1960 = vsyncadd %s1943, %s1959
          %s1961 = smul.addr %s32, 128
          %s1962 = scalar_lea.hbm %s11, %s1961
          %s1964 = sshll.u32 %s1946, 4
          %s1965 = int_to_ptr.vmem [resolvable:$true] %s1964
          %1967 = dma.vmem_to_hbm [thread:$0]  %s1965, 128, %s1962, %s1943
        $region80: #{tpu_custom_call.1} parent=63 // pred_fallthru
          _
        // Predicated region
        $region81: #{tpu_custom_call.1} parent=63 // pred_check
          %p1968 = pneg %p322
        $region82: #{tpu_custom_call.1} parent=63 // pred_check_branch
          %1970 = sbr.rel (%p1968) target = $region84
        $region83: #{tpu_custom_call.1} parent=63 // pred_region
          _
        $region84: #{tpu_custom_call.1} parent=63 // pred_fallthru
          _
        // Predicated region
        $region85: #{tpu_custom_call.1} parent=63 // pred_check
          %p1971 = pneg %p348
        $region86: #{tpu_custom_call.1} parent=63 // pred_check_branch
          %1973 = sbr.rel (%p1971) target = $region88
        $region87: #{tpu_custom_call.1} parent=63 // pred_region
          _
        $region88: #{tpu_custom_call.1} parent=63 // pred_fallthru
          _
      $region64: #{tpu_custom_call.1} parent=5 // pred_fallthru
        _
      %p1974 = scmp.le.s32.totalorder 2, %s27
      // Predicated region
      $region89: #{tpu_custom_call.1} parent=5 // pred_check
        %p1975 = pneg %p1974
      $region90: #{tpu_custom_call.1} parent=5 // pred_check_branch
        %1977 = sbr.rel (%p1975) target = $region92
      $region91: #{tpu_custom_call.1} parent=5 // pred_region
        %s1978 = ssub.s32 %s27, 2
        // Predicated region
        $region93: #{tpu_custom_call.1} parent=91 // pred_check
          %p1979 = pneg %p302
        $region94: #{tpu_custom_call.1} parent=91 // pred_check_branch
          %1981 = sbr.rel (%p1979) target = $region96
        $region95: #{tpu_custom_call.1} parent=91 // pred_region
          %s1982 = sand.u32 %s287, 1
          %s1983 = scalar_lea.sflag [#allocation4], %s1982
          %s1984 = sand.u32 %s287, 1
          %s1985 = smul.addr %s1984, 8
          %s1986 = scalar_lea.vmem [#allocation8], %s1985
          %1987 = dma.done %s1983, 128
        $region96: #{tpu_custom_call.1} parent=91 // pred_fallthru
          _
        // Predicated region
        $region97: #{tpu_custom_call.1} parent=91 // pred_check
          %p1988 = pneg %p328
        $region98: #{tpu_custom_call.1} parent=91 // pred_check_branch
          %1990 = sbr.rel (%p1988) target = $region100
        $region99: #{tpu_custom_call.1} parent=91 // pred_region
          %p1991 = scmp.lt.s32.totalorder %s33, 1
          %s1992 = scalar_select %p1991, %s33, 1
          %s1993 = smul.addr %s1992, 8
          %s1994 = scalar_lea.vmem %s12, %s1993
        $region100: #{tpu_custom_call.1} parent=91 // pred_fallthru
          _
        // Predicated region
        $region101: #{tpu_custom_call.1} parent=91 // pred_check
          %p1995 = pneg %p354
        $region102: #{tpu_custom_call.1} parent=91 // pred_check_branch
          %1997 = sbr.rel (%p1995) target = $region104
        $region103: #{tpu_custom_call.1} parent=91 // pred_region
          %p1998 = scmp.lt.s32.totalorder %s33, 1
          %s1999 = scalar_select %p1998, %s33, 1
          %s2000 = smul.addr %s1999, 8
          %s2001 = scalar_lea.vmem %s13, %s2000
        $region104: #{tpu_custom_call.1} parent=91 // pred_fallthru
          _
      $region92: #{tpu_custom_call.1} parent=5 // pred_fallthru
        _
    $region6: #{tpu_custom_call.1} parent=1 // loop_footer
      %s31 = sadd.s32 1, %s27
    $region7: #{tpu_custom_call.1} parent=1 // loop_footer_branch
      %26 = sbr.rel target = $region3
    $region8: #{tpu_custom_call.1} parent=1 // loop_exit
      _
    %2002 = vsyncpa [#allocation3], 1
    %s2003 = scalar_lea.sflag [#allocation3], 1
    %2004 = vsyncpa %s2003, 1
    %2005 = vsyncpa [#allocation6], 1
    %2006 = vsyncpa [#allocation4], 1
    %s2007 = scalar_lea.sflag [#allocation4], 1
    %2008 = vsyncpa %s2007, 1

</llo_original>
